<compile_context>
chip_gen: v5e
topology: v5e:2x2
jax: 0.10.0
libtpu: 0.0.40
codegen_flags: <defaults>
</compile_context>

<pallas_src>
import math

import numpy as np
import jax
import jax.numpy as jnp
from jax.experimental import pallas as pl
from jax.experimental.pallas import tpu as pltpu

# ----------------------------- model config ---------------------------------
INPUT_SIZE = 4          # f
HIDDEN = 32             # e
NUM_LAYERS = 2
NUM_HEADS = 4
HEAD_DIM = HIDDEN // NUM_HEADS
OUTPUT_SIZE = 1
SEQ = 8                 # s (<= 10, the positional-encoding max_len)
BATCH = 2               # b
LN_EPS = 1e-5

_F, _E, _L, _FF = INPUT_SIZE, HIDDEN, NUM_LAYERS, 4 * HIDDEN

# --- 32-lane bf16 weight-slab row offsets ---
_W_LIN = 0                               # folded Time2Vec-linear -> embedding   (f rows)
_W_PER = _F                              # Time2Vec periodic^T, lane-padded      (f rows)
_W_REST = 2 * _F                         # embedding weight for periodic part    (e rows)
_W_LAYER0 = 2 * _F + _E                  # per-layer [WqT*s, WkT, WvT, WoT, ff_w2T]
_W_LSTRIDE = 4 * _E + _FF                # 256 rows per layer
_W_HEAD1 = _W_LAYER0 + _L * _W_LSTRIDE   # head_w1^T padded to e lanes           (e rows)

_OUT_LANES = 128                         # lane-dense output slab width
_ROWS_PER_BLOCK = 256                    # target activation rows per grid step


# ----------------------------- kernel helpers --------------------------------
def _layernorm(x2d, g, b):
    mu = jnp.mean(x2d, axis=-1, keepdims=True)
    xc = x2d - mu
    var = jnp.mean(xc * xc, axis=-1, keepdims=True)
    return xc * jax.lax.rsqrt(var + LN_EPS) * g + b


def _gelu_tanh(x):
    # tanh-approximate GELU: transcendental lands on the EUP slot, short VALU chain.
    c = math.sqrt(2.0 / math.pi)
    return 0.5 * x * (1.0 + jnp.tanh(c * (x + 0.044715 * (x * x * x))))


# ----------------------------- fused Pallas kernel ---------------------------
def fused_forward_kernel(x_ref, w_ref, w1_ref, v_ref, o_ref):
    """One grid step = IB independent (b, s, f) instances, whole forward pass.

    x_ref : (IB, b, s, f)            f32   input block
    w_ref : (584, e)                 bf16  32-lane matmul-weight slab
    w1_ref: (L*e + L, 4e)            bf16  128-lane slab (ff_w1^T per layer, then ff_b1)
    v_ref : (e + s + 2 + 9L + 3, e)  f32   vectors (hblk, pe, biases, LN params, head)
    o_ref : (IB, b, 128)             f32   lane-dense output (scalar broadcast over lanes)

    Activation rows are ordered (instance, bi, si); attention runs per (instance, si)
    over bi (faithful to nn.MultiheadAttention with batch_first=False on a (b, s, e) input).
    """
    ib, b, s, f = x_ref.shape
    e = HIDDEN
    rows = ib * b * s

    # ---- vector-slab offsets (static python ints at trace time) ----
    hblk = v_ref[0:e, :]                       # (e, e) block-diagonal head-grouping mask
    pe = v_ref[e:e + s, :]                     # (s, e)
    b_per = v_ref[e + s:e + s + 1, :]
    b_eff = v_ref[e + s + 1:e + s + 2, :]
    lyr_v0 = e + s + 2
    head_v0 = lyr_v0 + 9 * NUM_LAYERS

    # ---- Time2Vec + embedding + positional encoding (weights pre-folded) ----
    x2 = x_ref[...].reshape(rows, f).astype(jnp.bfloat16)
    w_lin = w_ref[_W_LIN:_W_LIN + f, :]
    w_per = w_ref[_W_PER:_W_PER + f, :]
    w_rest = w_ref[_W_REST:_W_REST + e, :]

    per = jnp.sin(jnp.dot(x2, w_per, preferred_element_type=jnp.float32) + b_per)
    h2 = (jnp.dot(x2, w_lin, preferred_element_type=jnp.float32)
          + jnp.dot(per.astype(jnp.bfloat16), w_rest, preferred_element_type=jnp.float32)
          + b_eff)
    # row ((i*b + bi)*s + si) gets pe[si]
    h2 = (h2.reshape(ib * b, s, e) + pe[None, :, :]).reshape(rows, e)

    # ---- transformer blocks (statically unrolled) ----
    for lyr in range(NUM_LAYERS):
        wb = _W_LAYER0 + lyr * _W_LSTRIDE
        wq = w_ref[wb:wb + e, :]                          # 1/sqrt(d) pre-folded
        wk = w_ref[wb + e:wb + 2 * e, :]
        wv = w_ref[wb + 2 * e:wb + 3 * e, :]
        wo = w_ref[wb + 3 * e:wb + 4 * e, :]
        w2 = w_ref[wb + 4 * e:wb + 4 * e + _FF, :]        # ff_w2^T (4e, e)

        av = v_ref[lyr_v0 + 9 * lyr:lyr_v0 + 9 * lyr + 9, :]
        bq, bk, bv, bo = av[0:1], av[1:2], av[2:3], av[3:4]
        g1, be1, g2, be2, fb2 = av[4:5], av[5:6], av[6:7], av[7:8], av[8:9]

        h2b = h2.astype(jnp.bfloat16)
        q = jnp.dot(h2b, wq, preferred_element_type=jnp.float32) + bq
        k = jnp.dot(h2b, wk, preferred_element_type=jnp.float32) + bk
        vv = jnp.dot(h2b, wv, preferred_element_type=jnp.float32) + bv

        q4 = q.reshape(ib, b, s, e)
        k4 = k.reshape(ib, b, s, e)
        v4 = vv.reshape(ib, b, s, e)

        # per-head scores replicated over each head's lanes via the block-diagonal mask:
        # scores[i, bq, bk, si, lane] = sum_{lanes of head(lane)} q4[i,bq,si,:] * k4[i,bk,si,:]
        qk = q4[:, :, None, :, :] * k4[:, None, :, :, :]                 # (ib, b, b, s, e)
        scores = jnp.dot(qk.reshape(ib * b * b * s, e), hblk,
                         preferred_element_type=jnp.float32
                         ).reshape(ib, b, b, s, e)
        smax = jnp.max(scores, axis=2, keepdims=True)
        pexp = jnp.exp(scores - smax)
        denom = jnp.sum(pexp, axis=2, keepdims=True)
        probs = pexp * pl.reciprocal(denom, approx=True)                 # (ib, b, b, s, e)

        attn = jnp.sum(probs * v4[:, None, :, :, :], axis=2)            # (ib, b, s, e)
        attended = jnp.dot(attn.reshape(rows, e).astype(jnp.bfloat16), wo,
                           preferred_element_type=jnp.float32) + bo
        h2 = _layernorm(attended + h2, g1, be1)

        # feed-forward: Linear -> GELU(tanh) -> Linear (dropout = identity)
        w1l = w1_ref[lyr * e:(lyr + 1) * e, :]                           # (e, 4e) bf16
        b1l = w1_ref[NUM_LAYERS * e + lyr:NUM_LAYERS * e + lyr + 1, :]   # (1, 4e) bf16
        ffh = _gelu_tanh(jnp.dot(h2.astype(jnp.bfloat16), w1l,
                                 preferred_element_type=jnp.float32)
                         + b1l.astype(jnp.float32))
        ffo = jnp.dot(ffh.astype(jnp.bfloat16), w2,
                      preferred_element_type=jnp.float32) + fb2
        h2 = _layernorm(ffo + h2, g2, be2)

    # ---- mean over the original seq axis + output MLP head ----
    pooled = jnp.mean(h2.reshape(ib * b, s, e), axis=1)                  # (ib*b, e)
    wh1 = w_ref[_W_HEAD1:_W_HEAD1 + e, :]                                # (e, e) zero-padded
    hb1 = v_ref[head_v0:head_v0 + 1, :]
    hw2 = v_ref[head_v0 + 1:head_v0 + 2, :]
    hb2 = v_ref[head_v0 + 2:head_v0 + 3, :]

    h1 = jnp.maximum(jnp.dot(pooled.astype(jnp.bfloat16), wh1,
                             preferred_element_type=jnp.float32) + hb1, 0.0)
    out = jnp.sum(h1 * hw2, axis=-1, keepdims=True) + hb2[0:1, 0:1]      # (ib*b, 1)
    out = jnp.broadcast_to(out, (ib * b, o_ref.shape[2]))                # lane-dense
    o_ref[...] = out.reshape(ib, b, o_ref.shape[2])


# ----------------------------- pallas_call glue -------------------------------
def forward(packed, x):
    """x: (b, s, f) or (num_instances, b, s, f) float32 -> (..., b, OUTPUT_SIZE)."""
    squeeze = (x.ndim == 3)
    if squeeze:
        x = x[None]
    ni, b, s, f = x.shape
    assert f == INPUT_SIZE
    assert OUTPUT_SIZE == 1                    # head hard-codes a single output column
    assert s == packed['seq'], "packed positional encoding was built for a different seq len"

    # instances per grid step: largest divisor of ni that keeps <= _ROWS_PER_BLOCK rows
    rows_per_inst = b * s
    max_ib = max(1, _ROWS_PER_BLOCK // rows_per_inst)
    ib = 1
    for d in range(1, min(ni, max_ib) + 1):
        if ni % d == 0:
            ib = d
    grid = (ni // ib,)

    wslab, w1slab, vslab = packed['wslab'], packed['w1slab'], packed['vslab']

    e = HIDDEN
    rows_t = ni * b * s
    flops = int(2 * rows_t * e * (2 * f + e)
                + NUM_LAYERS * (8 * rows_t * e * e
                                + 2 * ni * b * b * s * e * e
                                + 16 * rows_t * e * e)
                + 2 * ni * b * e * e)
    transc = int(rows_t * e + NUM_LAYERS * (ni * b * b * s * e + 4 * rows_t * e))
    bytes_acc = int(x.size * 4 + wslab.size * 2 + w1slab.size * 2
                    + vslab.size * 4 + ni * b * _OUT_LANES * 4)

    # TODO(synk): for back-to-back calls with the same weights, add a cross-call weight
    # prefetch (semaphore + VMEM outputs) so call i+1's slab DMA hides under call i's compute.
    out = pl.pallas_call(
        fused_forward_kernel,
        out_shape=jax.ShapeDtypeStruct((ni, b, _OUT_LANES), jnp.float32),
        grid=grid,
        in_specs=[
            pl.BlockSpec((ib, b, s, f), lambda i: (i, 0, 0, 0)),
            pl.BlockSpec(wslab.shape, lambda i: (0, 0)),    # constant index: fetched once,
            pl.BlockSpec(w1slab.shape, lambda i: (0, 0)),   # stays VMEM-resident across steps
            pl.BlockSpec(vslab.shape, lambda i: (0, 0)),
        ],
        out_specs=pl.BlockSpec((ib, b, _OUT_LANES), lambda i: (i, 0, 0)),
        compiler_params=pltpu.CompilerParams(dimension_semantics=("parallel",)),
        cost_estimate=pl.CostEstimate(flops=flops, transcendentals=transc,
                                      bytes_accessed=bytes_acc),
    )(x, wslab, w1slab, vslab)

    out = out[..., :OUTPUT_SIZE]
    return out[0] if squeeze else out


# ----------------------------- parameters ------------------------------------
def init_params(key):
    """Raw PyTorch-style parameters (used by the pure-JAX reference)."""
    ks = iter(jax.random.split(key, 64))

    def unif(shape, fan_in):
        bound = 1.0 / math.sqrt(fan_in)
        return jax.random.uniform(next(ks), shape, jnp.float32, -bound, bound)

    p = {
        't2v_lin_w': unif((1, INPUT_SIZE), INPUT_SIZE),
        't2v_lin_b': unif((1, 1), INPUT_SIZE),
        't2v_per_w': unif((INPUT_SIZE - 1, INPUT_SIZE), INPUT_SIZE),
        't2v_per_b': unif((1, INPUT_SIZE - 1), INPUT_SIZE),
        'emb_w': unif((HIDDEN, INPUT_SIZE), INPUT_SIZE),
        'emb_b': unif((1, HIDDEN), INPUT_SIZE),
    }

    # sinusoidal positional encoding, exactly as in the PyTorch module (max_len=10)
    pe = np.zeros((10, HIDDEN), np.float32)
    position = np.arange(10, dtype=np.float32)[:, None]
    div_term = np.exp(np.arange(0, HIDDEN, 2, dtype=np.float32)
                      * (-math.log(10000.0) / HIDDEN))
    pe[:, 0::2] = np.sin(position * div_term)
    pe[:, 1::2] = np.cos(position * div_term)
    p['pe'] = jnp.asarray(pe)

    layers = []
    for _ in range(NUM_LAYERS):
        layers.append({
            'in_w': unif((3 * HIDDEN, HIDDEN), HIDDEN),
            'in_b': unif((1, 3 * HIDDEN), HIDDEN),
            'out_w': unif((HIDDEN, HIDDEN), HIDDEN),
            'out_b': unif((1, HIDDEN), HIDDEN),
            'ln1_g': jnp.ones((1, HIDDEN), jnp.float32),
            'ln1_b': jnp.zeros((1, HIDDEN), jnp.float32),
            'ff_w1': unif((4 * HIDDEN, HIDDEN), HIDDEN),
            'ff_b1': unif((1, 4 * HIDDEN), HIDDEN),
            'ff_w2': unif((HIDDEN, 4 * HIDDEN), 4 * HIDDEN),
            'ff_b2': unif((1, HIDDEN), 4 * HIDDEN),
            'ln2_g': jnp.ones((1, HIDDEN), jnp.float32),
            'ln2_b': jnp.zeros((1, HIDDEN), jnp.float32),
        })
    p['layers'] = layers

    p['head_w1'] = unif((HIDDEN // 2, HIDDEN), HIDDEN)
    p['head_b1'] = unif((1, HIDDEN // 2), HIDDEN)
    p['head_w2'] = unif((OUTPUT_SIZE, HIDDEN // 2), HIDDEN // 2)
    p['head_b2'] = unif((1, OUTPUT_SIZE), HIDDEN // 2)
    return p


def pack_params(p, s):
    """One-time host-side packing: 3 coalesced, pre-transposed, lane-dense slabs."""
    assert s <= 10
    f, e = INPUT_SIZE, HIDDEN
    scale = 1.0 / math.sqrt(HEAD_DIM)

    # ---- embedding folding (Time2Vec-linear folded into the embedding matmul) ----
    we_t = p['emb_w'].T                                              # (f, e)
    w_lin = p['t2v_lin_w'].T @ we_t[0:1, :]                          # (f, e)
    b_eff = p['t2v_lin_b'][0, 0] * we_t[0, :] + p['emb_b'][0]        # (e,)
    w_per = jnp.zeros((f, e), jnp.float32).at[:, :f - 1].set(p['t2v_per_w'].T)
    b_per = jnp.zeros((e,), jnp.float32).at[:f - 1].set(p['t2v_per_b'][0])
    w_rest = jnp.zeros((e, e), jnp.float32).at[:f - 1, :].set(we_t[1:, :])

    # ---- 32-lane bf16 matmul-weight slab ----
    w_rows = [w_lin, w_per, w_rest]
    for lyr in p['layers']:
        in_w = lyr['in_w']
        w_rows += [in_w[0:e].T * scale, in_w[e:2 * e].T, in_w[2 * e:3 * e].T,
                   lyr['out_w'].T, lyr['ff_w2'].T]
    w_rows.append(jnp.zeros((e, e), jnp.float32).at[:, :e // 2].set(p['head_w1'].T))
    wslab = jnp.concatenate(w_rows, axis=0).astype(jnp.bfloat16)
    assert wslab.shape == (_W_HEAD1 + e, e)

    # ---- 128-lane bf16 slab: per-layer ff_w1^T, then per-layer ff_b1 ----
    w1slab = jnp.concatenate([lyr['ff_w1'].T for lyr in p['layers']]
                             + [lyr['ff_b1'] for lyr in p['layers']],
                             axis=0).astype(jnp.bfloat16)

    # ---- f32 vector slab: hblk, pe, biases, LN params, head vectors ----
    head_grp = np.arange(e) // HEAD_DIM
    hblk = jnp.asarray((head_grp[:, None] == head_grp[None, :]).astype(np.float32))
    v_rows = [hblk, p['pe'][:s], b_per[None, :], b_eff[None, :]]
    for lyr in p['layers']:
        in_b = lyr['in_b'][0]
        v_rows += [(in_b[0:e] * scale)[None, :], in_b[e:2 * e][None, :],
                   in_b[2 * e:3 * e][None, :], lyr['out_b'],
                   lyr['ln1_g'], lyr['ln1_b'], lyr['ln2_g'], lyr['ln2_b'], lyr['ff_b2']]
    v_rows += [jnp.zeros((1, e), jnp.float32).at[0, :e // 2].set(p['head_b1'][0]),
               jnp.zeros((1, e), jnp.float32).at[0, :e // 2].set(p['head_w2'][0]),
               jnp.zeros((1, e), jnp.float32).at[0, 0].set(p['head_b2'][0, 0])]
    vslab = jnp.concatenate(v_rows, axis=0)

    return {'wslab': wslab, 'w1slab': w1slab, 'vslab': vslab, 'seq': int(s)}


# ----------------------------- pure-JAX reference -----------------------------
def _ln_ref(x, g, b):
    mu = jnp.mean(x, axis=-1, keepdims=True)
    xc = x - mu
    var = jnp.mean(xc * xc, axis=-1, keepdims=True)
    return xc / jnp.sqrt(var + LN_EPS) * g + b


def reference_forward(params, x):
    b, s, f = x.shape
    lin = x @ params['t2v_lin_w'].T + params['t2v_lin_b'][0]
    per = jnp.sin(x @ params['t2v_per_w'].T + params['t2v_per_b'][0])
    t2v = jnp.concatenate([lin, per], axis=-1)
    h = t2v @ params['emb_w'].T + params['emb_b'][0]
    h = h + params['pe'][:s][None, :, :]
    for lyr in params['layers']:
        L, N, E = h.shape                    # (b, s, h) interpreted as (L, N, E)
        qkv = h @ lyr['in_w'].T + lyr['in_b'][0]
        q, k, v = jnp.split(qkv, 3, axis=-1)
        qh = q.reshape(L, N, NUM_HEADS, HEAD_DIM)
        kh = k.reshape(L, N, NUM_HEADS, HEAD_DIM)
        vh = v.reshape(L, N, NUM_HEADS, HEAD_DIM)
        scores = jnp.einsum('lnhd,mnhd->nhlm', qh, kh) / math.sqrt(HEAD_DIM)
        p = jax.nn.softmax(scores, axis=-1)
        o = jnp.einsum('nhlm,mnhd->lnhd', p, vh).reshape(L, N, E)
        attended = o @ lyr['out_w'].T + lyr['out_b'][0]
        h = _ln_ref(attended + h, lyr['ln1_g'][0], lyr['ln1_b'][0])
        ff = jax.nn.gelu(h @ lyr['ff_w1'].T + lyr['ff_b1'][0], approximate=False)
        ff = ff @ lyr['ff_w2'].T + lyr['ff_b2'][0]
        h = _ln_ref(ff + h, lyr['ln2_g'][0], lyr['ln2_b'][0])
    pooled = h.mean(axis=1)
    o1 = jax.nn.relu(pooled @ params['head_w1'].T + params['head_b1'][0])
    return o1 @ params['head_w2'].T + params['head_b2'][0]


# ----------------------------- main -------------------------------------------
if __name__ == "__main__":
    key = jax.random.PRNGKey(0)
    pkey, xkey, mkey = jax.random.split(key, 3)
    raw_params = init_params(pkey)
    packed = pack_params(raw_params, SEQ)          # one-time host-side packing

    # packed slabs stay device-resident; jit keeps the (tiny) host glue in one executable
    fwd = jax.jit(lambda xx: forward(packed, xx))

    # module-faithful single example: (batch=2, seq=8, features=4)
    x = jax.random.normal(xkey, (BATCH, SEQ, INPUT_SIZE), dtype=jnp.float32)
    out = jax.block_until_ready(fwd(x))
    assert out.shape == (BATCH, OUTPUT_SIZE)
    ref = reference_forward(raw_params, x)
    ok_single = np.allclose(np.asarray(out), np.asarray(ref), rtol=5e-2, atol=3e-2)

    # independent-instance batching exercising the parallel grid (2 blocks x 16 instances)
    xm = jax.random.normal(mkey, (32, BATCH, SEQ, INPUT_SIZE), dtype=jnp.float32)
    outm = jax.block_until_ready(fwd(xm))
    refm = jax.vmap(lambda xi: reference_forward(raw_params, xi))(xm)
    ok_multi = np.allclose(np.asarray(outm), np.asarray(refm), rtol=5e-2, atol=3e-2)

    if not (ok_single and ok_multi):
        d1 = float(np.max(np.abs(np.asarray(out) - np.asarray(ref))))
        d2 = float(np.max(np.abs(np.asarray(outm) - np.asarray(refm))))
        raise AssertionError(f"kernel/reference mismatch: single={d1}, batched={d2}")

    print("KERNEL_OK")
</pallas_src>

<mosaic_0001>
module attributes {stable_mosaic.version = 11 : i64} {
  func.func @fused_forward_kernel(%arg0: i32, %arg1: memref<1x2x8x4xf32, #tpu.memory_space<vmem>>, %arg2: memref<584x32xbf16, #tpu.memory_space<vmem>>, %arg3: memref<66x128xbf16, #tpu.memory_space<vmem>>, %arg4: memref<63x32xf32, #tpu.memory_space<vmem>>, %arg5: memref<1x2x128xf32, #tpu.memory_space<vmem>>) attributes {dimension_semantics = [#tpu.dimension_semantics<parallel>], iteration_bounds = array<i64: 1>, scalar_prefetch = 0 : i64, scratch_operands = 0 : i64, tpu.core_type = #tpu.core_type<tc>, window_params = [{transform_indices = @transform_0, window_bounds = array<i64: 1, 2, 8, 4>}, {pipeline_mode = #tpu.pipeline_mode<synchronous>, transform_indices = @transform_1, window_bounds = array<i64: 584, 32>}, {pipeline_mode = #tpu.pipeline_mode<synchronous>, transform_indices = @transform_2, window_bounds = array<i64: 66, 128>}, {pipeline_mode = #tpu.pipeline_mode<synchronous>, transform_indices = @transform_3, window_bounds = array<i64: 63, 32>}, {transform_indices = @transform_4, window_bounds = array<i64: 1, 2, 128>}]} {
    %c0 = arith.constant 0 : index
    %c0_0 = arith.constant 0 : index
    %0 = vector.load %arg4[%c0, %c0_0] : memref<63x32xf32, #tpu.memory_space<vmem>>, vector<32x32xf32>
    %c32 = arith.constant 32 : index
    %c0_1 = arith.constant 0 : index
    %1 = vector.load %arg4[%c32, %c0_1] : memref<63x32xf32, #tpu.memory_space<vmem>>, vector<8x32xf32>
    %c40 = arith.constant 40 : index
    %c0_2 = arith.constant 0 : index
    %2 = vector.load %arg4[%c40, %c0_2] : memref<63x32xf32, #tpu.memory_space<vmem>>, vector<1x32xf32>
    %c41 = arith.constant 41 : index
    %c0_3 = arith.constant 0 : index
    %3 = vector.load %arg4[%c41, %c0_3] : memref<63x32xf32, #tpu.memory_space<vmem>>, vector<1x32xf32>
    %c0_4 = arith.constant 0 : index
    %c0_5 = arith.constant 0 : index
    %c0_6 = arith.constant 0 : index
    %c0_7 = arith.constant 0 : index
    %4 = vector.load %arg1[%c0_4, %c0_5, %c0_6, %c0_7] : memref<1x2x8x4xf32, #tpu.memory_space<vmem>>, vector<1x2x8x4xf32>
    %5 = vector.shape_cast %4 : vector<1x2x8x4xf32> to vector<16x4xf32>
    %6 = arith.truncf %5 : vector<16x4xf32> to vector<16x4xbf16>
    %c0_8 = arith.constant 0 : index
    %c0_9 = arith.constant 0 : index
    %7 = vector.load %arg2[%c0_8, %c0_9] : memref<584x32xbf16, #tpu.memory_space<vmem>>, vector<4x32xbf16>
    %c4 = arith.constant 4 : index
    %c0_10 = arith.constant 0 : index
    %8 = vector.load %arg2[%c4, %c0_10] : memref<584x32xbf16, #tpu.memory_space<vmem>>, vector<4x32xbf16>
    %c8 = arith.constant 8 : index
    %c0_11 = arith.constant 0 : index
    %9 = vector.load %arg2[%c8, %c0_11] : memref<584x32xbf16, #tpu.memory_space<vmem>>, vector<32x32xbf16>
    %cst = arith.constant dense<0.000000e+00> : vector<16x32xf32>
    %10 = tpu.matmul %6, %8, %cst {dimension_numbers = #tpu.dot_dimension_numbers<[1], [0], [0], [1], [0, 0, 1, 1], [], []>} : vector<16x4xbf16>, vector<4x32xbf16>, vector<16x32xf32> -> vector<16x32xf32>
    %11 = vector.broadcast %2 : vector<1x32xf32> to vector<16x32xf32>
    %12 = arith.addf %10, %11 : vector<16x32xf32>
    %13 = math.sin %12 : vector<16x32xf32>
    %cst_12 = arith.constant dense<0.000000e+00> : vector<16x32xf32>
    %14 = tpu.matmul %6, %7, %cst_12 {dimension_numbers = #tpu.dot_dimension_numbers<[1], [0], [0], [1], [0, 0, 1, 1], [], []>} : vector<16x4xbf16>, vector<4x32xbf16>, vector<16x32xf32> -> vector<16x32xf32>
    %15 = arith.truncf %13 : vector<16x32xf32> to vector<16x32xbf16>
    %cst_13 = arith.constant dense<0.000000e+00> : vector<16x32xf32>
    %16 = tpu.matmul %15, %9, %cst_13 {dimension_numbers = #tpu.dot_dimension_numbers<[1], [0], [0], [1], [0, 0, 1, 1], [], []>} : vector<16x32xbf16>, vector<32x32xbf16>, vector<16x32xf32> -> vector<16x32xf32>
    %17 = arith.addf %14, %16 : vector<16x32xf32>
    %18 = vector.broadcast %3 : vector<1x32xf32> to vector<16x32xf32>
    %19 = arith.addf %17, %18 : vector<16x32xf32>
    %20 = vector.shape_cast %19 : vector<16x32xf32> to vector<2x8x32xf32>
    %21 = vector.shape_cast %1 : vector<8x32xf32> to vector<1x8x32xf32>
    %22 = vector.broadcast %21 : vector<1x8x32xf32> to vector<2x8x32xf32>
    %23 = arith.addf %20, %22 : vector<2x8x32xf32>
    %24 = vector.shape_cast %23 : vector<2x8x32xf32> to vector<16x32xf32>
    %c40_14 = arith.constant 40 : index
    %c0_15 = arith.constant 0 : index
    %25 = vector.load %arg2[%c40_14, %c0_15] : memref<584x32xbf16, #tpu.memory_space<vmem>>, vector<32x32xbf16>
    %c72 = arith.constant 72 : index
    %c0_16 = arith.constant 0 : index
    %26 = vector.load %arg2[%c72, %c0_16] : memref<584x32xbf16, #tpu.memory_space<vmem>>, vector<32x32xbf16>
    %c104 = arith.constant 104 : index
    %c0_17 = arith.constant 0 : index
    %27 = vector.load %arg2[%c104, %c0_17] : memref<584x32xbf16, #tpu.memory_space<vmem>>, vector<32x32xbf16>
    %c136 = arith.constant 136 : index
    %c0_18 = arith.constant 0 : index
    %28 = vector.load %arg2[%c136, %c0_18] : memref<584x32xbf16, #tpu.memory_space<vmem>>, vector<32x32xbf16>
    %c168 = arith.constant 168 : index
    %c0_19 = arith.constant 0 : index
    %29 = vector.load %arg2[%c168, %c0_19] : memref<584x32xbf16, #tpu.memory_space<vmem>>, vector<128x32xbf16>
    %c42 = arith.constant 42 : index
    %c0_20 = arith.constant 0 : index
    %30 = vector.load %arg4[%c42, %c0_20] : memref<63x32xf32, #tpu.memory_space<vmem>>, vector<9x32xf32>
    %31 = vector.extract_strided_slice %30 {offsets = [0, 0], sizes = [1, 32], strides = [1, 1]} : vector<9x32xf32> to vector<1x32xf32>
    %32 = vector.extract_strided_slice %30 {offsets = [1, 0], sizes = [1, 32], strides = [1, 1]} : vector<9x32xf32> to vector<1x32xf32>
    %33 = vector.extract_strided_slice %30 {offsets = [2, 0], sizes = [1, 32], strides = [1, 1]} : vector<9x32xf32> to vector<1x32xf32>
    %34 = vector.extract_strided_slice %30 {offsets = [3, 0], sizes = [1, 32], strides = [1, 1]} : vector<9x32xf32> to vector<1x32xf32>
    %35 = vector.extract_strided_slice %30 {offsets = [4, 0], sizes = [1, 32], strides = [1, 1]} : vector<9x32xf32> to vector<1x32xf32>
    %36 = vector.extract_strided_slice %30 {offsets = [5, 0], sizes = [1, 32], strides = [1, 1]} : vector<9x32xf32> to vector<1x32xf32>
    %37 = vector.extract_strided_slice %30 {offsets = [6, 0], sizes = [1, 32], strides = [1, 1]} : vector<9x32xf32> to vector<1x32xf32>
    %38 = vector.extract_strided_slice %30 {offsets = [7, 0], sizes = [1, 32], strides = [1, 1]} : vector<9x32xf32> to vector<1x32xf32>
    %39 = vector.extract_strided_slice %30 {offsets = [8, 0], sizes = [1, 32], strides = [1, 1]} : vector<9x32xf32> to vector<1x32xf32>
    %40 = arith.truncf %24 : vector<16x32xf32> to vector<16x32xbf16>
    %cst_21 = arith.constant dense<0.000000e+00> : vector<16x32xf32>
    %41 = tpu.matmul %40, %25, %cst_21 {dimension_numbers = #tpu.dot_dimension_numbers<[1], [0], [0], [1], [0, 0, 1, 1], [], []>} : vector<16x32xbf16>, vector<32x32xbf16>, vector<16x32xf32> -> vector<16x32xf32>
    %42 = vector.broadcast %31 : vector<1x32xf32> to vector<16x32xf32>
    %43 = arith.addf %41, %42 : vector<16x32xf32>
    %cst_22 = arith.constant dense<0.000000e+00> : vector<16x32xf32>
    %44 = tpu.matmul %40, %26, %cst_22 {dimension_numbers = #tpu.dot_dimension_numbers<[1], [0], [0], [1], [0, 0, 1, 1], [], []>} : vector<16x32xbf16>, vector<32x32xbf16>, vector<16x32xf32> -> vector<16x32xf32>
    %45 = vector.broadcast %32 : vector<1x32xf32> to vector<16x32xf32>
    %46 = arith.addf %44, %45 : vector<16x32xf32>
    %cst_23 = arith.constant dense<0.000000e+00> : vector<16x32xf32>
    %47 = tpu.matmul %40, %27, %cst_23 {dimension_numbers = #tpu.dot_dimension_numbers<[1], [0], [0], [1], [0, 0, 1, 1], [], []>} : vector<16x32xbf16>, vector<32x32xbf16>, vector<16x32xf32> -> vector<16x32xf32>
    %48 = vector.broadcast %33 : vector<1x32xf32> to vector<16x32xf32>
    %49 = arith.addf %47, %48 : vector<16x32xf32>
    %50 = vector.shape_cast %43 : vector<16x32xf32> to vector<1x2x8x32xf32>
    %51 = vector.shape_cast %46 : vector<16x32xf32> to vector<1x2x8x32xf32>
    %52 = vector.shape_cast %49 : vector<16x32xf32> to vector<1x2x8x32xf32>
    %53 = vector.shape_cast %50 : vector<1x2x8x32xf32> to vector<1x2x1x8x32xf32>
    %54 = vector.shape_cast %51 : vector<1x2x8x32xf32> to vector<1x1x2x8x32xf32>
    %55 = vector.broadcast %53 : vector<1x2x1x8x32xf32> to vector<1x2x2x8x32xf32>
    %56 = vector.broadcast %54 : vector<1x1x2x8x32xf32> to vector<1x2x2x8x32xf32>
    %57 = arith.mulf %55, %56 : vector<1x2x2x8x32xf32>
    %58 = vector.shape_cast %57 : vector<1x2x2x8x32xf32> to vector<32x32xf32>
    %cst_24 = arith.constant dense<0.000000e+00> : vector<32x32xf32>
    %59 = tpu.matmul %58, %0, %cst_24 {dimension_numbers = #tpu.dot_dimension_numbers<[1], [0], [0], [1], [0, 0, 1, 1], [], []>} : vector<32x32xf32>, vector<32x32xf32>, vector<32x32xf32> -> vector<32x32xf32>
    %60 = vector.shape_cast %59 : vector<32x32xf32> to vector<1x2x2x8x32xf32>
    %cst_25 = arith.constant dense<0xFF800000> : vector<1x2x8x32xf32>
    %61 = vector.multi_reduction <maximumf>, %60, %cst_25 [2] : vector<1x2x2x8x32xf32> to vector<1x2x8x32xf32>
    %62 = vector.shape_cast %61 : vector<1x2x8x32xf32> to vector<1x2x1x8x32xf32>
    %63 = vector.broadcast %62 : vector<1x2x1x8x32xf32> to vector<1x2x2x8x32xf32>
    %64 = arith.subf %60, %63 : vector<1x2x2x8x32xf32>
    %65 = math.exp %64 : vector<1x2x2x8x32xf32>
    %cst_26 = arith.constant dense<0.000000e+00> : vector<1x2x8x32xf32>
    %66 = vector.multi_reduction <add>, %65, %cst_26 [2] : vector<1x2x2x8x32xf32> to vector<1x2x8x32xf32>
    %67 = vector.shape_cast %66 : vector<1x2x8x32xf32> to vector<1x2x1x8x32xf32>
    %68 = tpu.reciprocal %67 {approx = true} : vector<1x2x1x8x32xf32> -> vector<1x2x1x8x32xf32>
    %69 = vector.broadcast %68 : vector<1x2x1x8x32xf32> to vector<1x2x2x8x32xf32>
    %70 = arith.mulf %65, %69 : vector<1x2x2x8x32xf32>
    %71 = vector.shape_cast %52 : vector<1x2x8x32xf32> to vector<1x1x2x8x32xf32>
    %72 = vector.broadcast %71 : vector<1x1x2x8x32xf32> to vector<1x2x2x8x32xf32>
    %73 = arith.mulf %70, %72 : vector<1x2x2x8x32xf32>
    %cst_27 = arith.constant dense<0.000000e+00> : vector<1x2x8x32xf32>
    %74 = vector.multi_reduction <add>, %73, %cst_27 [2] : vector<1x2x2x8x32xf32> to vector<1x2x8x32xf32>
    %75 = vector.shape_cast %74 : vector<1x2x8x32xf32> to vector<16x32xf32>
    %76 = arith.truncf %75 : vector<16x32xf32> to vector<16x32xbf16>
    %cst_28 = arith.constant dense<0.000000e+00> : vector<16x32xf32>
    %77 = tpu.matmul %76, %28, %cst_28 {dimension_numbers = #tpu.dot_dimension_numbers<[1], [0], [0], [1], [0, 0, 1, 1], [], []>} : vector<16x32xbf16>, vector<32x32xbf16>, vector<16x32xf32> -> vector<16x32xf32>
    %78 = vector.broadcast %34 : vector<1x32xf32> to vector<16x32xf32>
    %79 = arith.addf %77, %78 : vector<16x32xf32>
    %80 = arith.addf %79, %24 : vector<16x32xf32>
    %cst_29 = arith.constant dense<0.000000e+00> : vector<16xf32>
    %81 = vector.multi_reduction <add>, %80, %cst_29 [1] : vector<16x32xf32> to vector<16xf32>
    %82 = vector.shape_cast %81 : vector<16xf32> to vector<16x1xf32>
    %cst_30 = arith.constant 3.200000e+01 : f32
    %83 = vector.broadcast %cst_30 : f32 to vector<16x1xf32>
    %84 = arith.divf %82, %83 : vector<16x1xf32>
    %85 = vector.broadcast %84 : vector<16x1xf32> to vector<16x32xf32>
    %86 = arith.subf %80, %85 : vector<16x32xf32>
    %87 = arith.mulf %86, %86 : vector<16x32xf32>
    %cst_31 = arith.constant dense<0.000000e+00> : vector<16xf32>
    %88 = vector.multi_reduction <add>, %87, %cst_31 [1] : vector<16x32xf32> to vector<16xf32>
    %89 = vector.shape_cast %88 : vector<16xf32> to vector<16x1xf32>
    %cst_32 = arith.constant 3.200000e+01 : f32
    %90 = vector.broadcast %cst_32 : f32 to vector<16x1xf32>
    %91 = arith.divf %89, %90 : vector<16x1xf32>
    %cst_33 = arith.constant 9.99999974E-6 : f32
    %92 = vector.broadcast %cst_33 : f32 to vector<16x1xf32>
    %93 = arith.addf %91, %92 : vector<16x1xf32>
    %94 = math.rsqrt %93 : vector<16x1xf32>
    %95 = vector.broadcast %94 : vector<16x1xf32> to vector<16x32xf32>
    %96 = arith.mulf %86, %95 : vector<16x32xf32>
    %97 = vector.broadcast %35 : vector<1x32xf32> to vector<16x32xf32>
    %98 = arith.mulf %96, %97 : vector<16x32xf32>
    %99 = vector.broadcast %36 : vector<1x32xf32> to vector<16x32xf32>
    %100 = arith.addf %98, %99 : vector<16x32xf32>
    %c0_34 = arith.constant 0 : index
    %c0_35 = arith.constant 0 : index
    %101 = vector.load %arg3[%c0_34, %c0_35] : memref<66x128xbf16, #tpu.memory_space<vmem>>, vector<32x128xbf16>
    %c64 = arith.constant 64 : index
    %c0_36 = arith.constant 0 : index
    %102 = vector.load %arg3[%c64, %c0_36] : memref<66x128xbf16, #tpu.memory_space<vmem>>, vector<1x128xbf16>
    %103 = arith.truncf %100 : vector<16x32xf32> to vector<16x32xbf16>
    %cst_37 = arith.constant dense<0.000000e+00> : vector<16x128xf32>
    %104 = tpu.matmul %103, %101, %cst_37 {dimension_numbers = #tpu.dot_dimension_numbers<[1], [0], [0], [1], [0, 0, 1, 1], [], []>} : vector<16x32xbf16>, vector<32x128xbf16>, vector<16x128xf32> -> vector<16x128xf32>
    %105 = arith.extf %102 : vector<1x128xbf16> to vector<1x128xf32>
    %106 = vector.broadcast %105 : vector<1x128xf32> to vector<16x128xf32>
    %107 = arith.addf %104, %106 : vector<16x128xf32>
    %cst_38 = arith.constant 5.000000e-01 : f32
    %108 = vector.broadcast %cst_38 : f32 to vector<16x128xf32>
    %109 = arith.mulf %108, %107 : vector<16x128xf32>
    %110 = arith.mulf %107, %107 : vector<16x128xf32>
    %111 = arith.mulf %110, %107 : vector<16x128xf32>
    %cst_39 = arith.constant 4.471500e-02 : f32
    %112 = vector.broadcast %cst_39 : f32 to vector<16x128xf32>
    %113 = arith.mulf %112, %111 : vector<16x128xf32>
    %114 = arith.addf %107, %113 : vector<16x128xf32>
    %cst_40 = arith.constant 0.797884583 : f32
    %115 = vector.broadcast %cst_40 : f32 to vector<16x128xf32>
    %116 = arith.mulf %115, %114 : vector<16x128xf32>
    %117 = math.tanh %116 : vector<16x128xf32>
    %cst_41 = arith.constant 1.000000e+00 : f32
    %118 = vector.broadcast %cst_41 : f32 to vector<16x128xf32>
    %119 = arith.addf %118, %117 : vector<16x128xf32>
    %120 = arith.mulf %109, %119 : vector<16x128xf32>
    %121 = arith.truncf %120 : vector<16x128xf32> to vector<16x128xbf16>
    %cst_42 = arith.constant dense<0.000000e+00> : vector<16x32xf32>
    %122 = tpu.matmul %121, %29, %cst_42 {dimension_numbers = #tpu.dot_dimension_numbers<[1], [0], [0], [1], [0, 0, 1, 1], [], []>} : vector<16x128xbf16>, vector<128x32xbf16>, vector<16x32xf32> -> vector<16x32xf32>
    %123 = vector.broadcast %39 : vector<1x32xf32> to vector<16x32xf32>
    %124 = arith.addf %122, %123 : vector<16x32xf32>
    %125 = arith.addf %124, %100 : vector<16x32xf32>
    %cst_43 = arith.constant dense<0.000000e+00> : vector<16xf32>
    %126 = vector.multi_reduction <add>, %125, %cst_43 [1] : vector<16x32xf32> to vector<16xf32>
    %127 = vector.shape_cast %126 : vector<16xf32> to vector<16x1xf32>
    %cst_44 = arith.constant 3.200000e+01 : f32
    %128 = vector.broadcast %cst_44 : f32 to vector<16x1xf32>
    %129 = arith.divf %127, %128 : vector<16x1xf32>
    %130 = vector.broadcast %129 : vector<16x1xf32> to vector<16x32xf32>
    %131 = arith.subf %125, %130 : vector<16x32xf32>
    %132 = arith.mulf %131, %131 : vector<16x32xf32>
    %cst_45 = arith.constant dense<0.000000e+00> : vector<16xf32>
    %133 = vector.multi_reduction <add>, %132, %cst_45 [1] : vector<16x32xf32> to vector<16xf32>
    %134 = vector.shape_cast %133 : vector<16xf32> to vector<16x1xf32>
    %cst_46 = arith.constant 3.200000e+01 : f32
    %135 = vector.broadcast %cst_46 : f32 to vector<16x1xf32>
    %136 = arith.divf %134, %135 : vector<16x1xf32>
    %cst_47 = arith.constant 9.99999974E-6 : f32
    %137 = vector.broadcast %cst_47 : f32 to vector<16x1xf32>
    %138 = arith.addf %136, %137 : vector<16x1xf32>
    %139 = math.rsqrt %138 : vector<16x1xf32>
    %140 = vector.broadcast %139 : vector<16x1xf32> to vector<16x32xf32>
    %141 = arith.mulf %131, %140 : vector<16x32xf32>
    %142 = vector.broadcast %37 : vector<1x32xf32> to vector<16x32xf32>
    %143 = arith.mulf %141, %142 : vector<16x32xf32>
    %144 = vector.broadcast %38 : vector<1x32xf32> to vector<16x32xf32>
    %145 = arith.addf %143, %144 : vector<16x32xf32>
    %c296 = arith.constant 296 : index
    %c0_48 = arith.constant 0 : index
    %146 = vector.load %arg2[%c296, %c0_48] : memref<584x32xbf16, #tpu.memory_space<vmem>>, vector<32x32xbf16>
    %c328 = arith.constant 328 : index
    %c0_49 = arith.constant 0 : index
    %147 = vector.load %arg2[%c328, %c0_49] : memref<584x32xbf16, #tpu.memory_space<vmem>>, vector<32x32xbf16>
    %c360 = arith.constant 360 : index
    %c0_50 = arith.constant 0 : index
    %148 = vector.load %arg2[%c360, %c0_50] : memref<584x32xbf16, #tpu.memory_space<vmem>>, vector<32x32xbf16>
    %c392 = arith.constant 392 : index
    %c0_51 = arith.constant 0 : index
    %149 = vector.load %arg2[%c392, %c0_51] : memref<584x32xbf16, #tpu.memory_space<vmem>>, vector<32x32xbf16>
    %c424 = arith.constant 424 : index
    %c0_52 = arith.constant 0 : index
    %150 = vector.load %arg2[%c424, %c0_52] : memref<584x32xbf16, #tpu.memory_space<vmem>>, vector<128x32xbf16>
    %c51 = arith.constant 51 : index
    %c0_53 = arith.constant 0 : index
    %151 = vector.load %arg4[%c51, %c0_53] : memref<63x32xf32, #tpu.memory_space<vmem>>, vector<9x32xf32>
    %152 = vector.extract_strided_slice %151 {offsets = [0, 0], sizes = [1, 32], strides = [1, 1]} : vector<9x32xf32> to vector<1x32xf32>
    %153 = vector.extract_strided_slice %151 {offsets = [1, 0], sizes = [1, 32], strides = [1, 1]} : vector<9x32xf32> to vector<1x32xf32>
    %154 = vector.extract_strided_slice %151 {offsets = [2, 0], sizes = [1, 32], strides = [1, 1]} : vector<9x32xf32> to vector<1x32xf32>
    %155 = vector.extract_strided_slice %151 {offsets = [3, 0], sizes = [1, 32], strides = [1, 1]} : vector<9x32xf32> to vector<1x32xf32>
    %156 = vector.extract_strided_slice %151 {offsets = [4, 0], sizes = [1, 32], strides = [1, 1]} : vector<9x32xf32> to vector<1x32xf32>
    %157 = vector.extract_strided_slice %151 {offsets = [5, 0], sizes = [1, 32], strides = [1, 1]} : vector<9x32xf32> to vector<1x32xf32>
    %158 = vector.extract_strided_slice %151 {offsets = [6, 0], sizes = [1, 32], strides = [1, 1]} : vector<9x32xf32> to vector<1x32xf32>
    %159 = vector.extract_strided_slice %151 {offsets = [7, 0], sizes = [1, 32], strides = [1, 1]} : vector<9x32xf32> to vector<1x32xf32>
    %160 = vector.extract_strided_slice %151 {offsets = [8, 0], sizes = [1, 32], strides = [1, 1]} : vector<9x32xf32> to vector<1x32xf32>
    %161 = arith.truncf %145 : vector<16x32xf32> to vector<16x32xbf16>
    %cst_54 = arith.constant dense<0.000000e+00> : vector<16x32xf32>
    %162 = tpu.matmul %161, %146, %cst_54 {dimension_numbers = #tpu.dot_dimension_numbers<[1], [0], [0], [1], [0, 0, 1, 1], [], []>} : vector<16x32xbf16>, vector<32x32xbf16>, vector<16x32xf32> -> vector<16x32xf32>
    %163 = vector.broadcast %152 : vector<1x32xf32> to vector<16x32xf32>
    %164 = arith.addf %162, %163 : vector<16x32xf32>
    %cst_55 = arith.constant dense<0.000000e+00> : vector<16x32xf32>
    %165 = tpu.matmul %161, %147, %cst_55 {dimension_numbers = #tpu.dot_dimension_numbers<[1], [0], [0], [1], [0, 0, 1, 1], [], []>} : vector<16x32xbf16>, vector<32x32xbf16>, vector<16x32xf32> -> vector<16x32xf32>
    %166 = vector.broadcast %153 : vector<1x32xf32> to vector<16x32xf32>
    %167 = arith.addf %165, %166 : vector<16x32xf32>
    %cst_56 = arith.constant dense<0.000000e+00> : vector<16x32xf32>
    %168 = tpu.matmul %161, %148, %cst_56 {dimension_numbers = #tpu.dot_dimension_numbers<[1], [0], [0], [1], [0, 0, 1, 1], [], []>} : vector<16x32xbf16>, vector<32x32xbf16>, vector<16x32xf32> -> vector<16x32xf32>
    %169 = vector.broadcast %154 : vector<1x32xf32> to vector<16x32xf32>
    %170 = arith.addf %168, %169 : vector<16x32xf32>
    %171 = vector.shape_cast %164 : vector<16x32xf32> to vector<1x2x8x32xf32>
    %172 = vector.shape_cast %167 : vector<16x32xf32> to vector<1x2x8x32xf32>
    %173 = vector.shape_cast %170 : vector<16x32xf32> to vector<1x2x8x32xf32>
    %174 = vector.shape_cast %171 : vector<1x2x8x32xf32> to vector<1x2x1x8x32xf32>
    %175 = vector.shape_cast %172 : vector<1x2x8x32xf32> to vector<1x1x2x8x32xf32>
    %176 = vector.broadcast %174 : vector<1x2x1x8x32xf32> to vector<1x2x2x8x32xf32>
    %177 = vector.broadcast %175 : vector<1x1x2x8x32xf32> to vector<1x2x2x8x32xf32>
    %178 = arith.mulf %176, %177 : vector<1x2x2x8x32xf32>
    %179 = vector.shape_cast %178 : vector<1x2x2x8x32xf32> to vector<32x32xf32>
    %cst_57 = arith.constant dense<0.000000e+00> : vector<32x32xf32>
    %180 = tpu.matmul %179, %0, %cst_57 {dimension_numbers = #tpu.dot_dimension_numbers<[1], [0], [0], [1], [0, 0, 1, 1], [], []>} : vector<32x32xf32>, vector<32x32xf32>, vector<32x32xf32> -> vector<32x32xf32>
    %181 = vector.shape_cast %180 : vector<32x32xf32> to vector<1x2x2x8x32xf32>
    %cst_58 = arith.constant dense<0xFF800000> : vector<1x2x8x32xf32>
    %182 = vector.multi_reduction <maximumf>, %181, %cst_58 [2] : vector<1x2x2x8x32xf32> to vector<1x2x8x32xf32>
    %183 = vector.shape_cast %182 : vector<1x2x8x32xf32> to vector<1x2x1x8x32xf32>
    %184 = vector.broadcast %183 : vector<1x2x1x8x32xf32> to vector<1x2x2x8x32xf32>
    %185 = arith.subf %181, %184 : vector<1x2x2x8x32xf32>
    %186 = math.exp %185 : vector<1x2x2x8x32xf32>
    %cst_59 = arith.constant dense<0.000000e+00> : vector<1x2x8x32xf32>
    %187 = vector.multi_reduction <add>, %186, %cst_59 [2] : vector<1x2x2x8x32xf32> to vector<1x2x8x32xf32>
    %188 = vector.shape_cast %187 : vector<1x2x8x32xf32> to vector<1x2x1x8x32xf32>
    %189 = tpu.reciprocal %188 {approx = true} : vector<1x2x1x8x32xf32> -> vector<1x2x1x8x32xf32>
    %190 = vector.broadcast %189 : vector<1x2x1x8x32xf32> to vector<1x2x2x8x32xf32>
    %191 = arith.mulf %186, %190 : vector<1x2x2x8x32xf32>
    %192 = vector.shape_cast %173 : vector<1x2x8x32xf32> to vector<1x1x2x8x32xf32>
    %193 = vector.broadcast %192 : vector<1x1x2x8x32xf32> to vector<1x2x2x8x32xf32>
    %194 = arith.mulf %191, %193 : vector<1x2x2x8x32xf32>
    %cst_60 = arith.constant dense<0.000000e+00> : vector<1x2x8x32xf32>
    %195 = vector.multi_reduction <add>, %194, %cst_60 [2] : vector<1x2x2x8x32xf32> to vector<1x2x8x32xf32>
    %196 = vector.shape_cast %195 : vector<1x2x8x32xf32> to vector<16x32xf32>
    %197 = arith.truncf %196 : vector<16x32xf32> to vector<16x32xbf16>
    %cst_61 = arith.constant dense<0.000000e+00> : vector<16x32xf32>
    %198 = tpu.matmul %197, %149, %cst_61 {dimension_numbers = #tpu.dot_dimension_numbers<[1], [0], [0], [1], [0, 0, 1, 1], [], []>} : vector<16x32xbf16>, vector<32x32xbf16>, vector<16x32xf32> -> vector<16x32xf32>
    %199 = vector.broadcast %155 : vector<1x32xf32> to vector<16x32xf32>
    %200 = arith.addf %198, %199 : vector<16x32xf32>
    %201 = arith.addf %200, %145 : vector<16x32xf32>
    %cst_62 = arith.constant dense<0.000000e+00> : vector<16xf32>
    %202 = vector.multi_reduction <add>, %201, %cst_62 [1] : vector<16x32xf32> to vector<16xf32>
    %203 = vector.shape_cast %202 : vector<16xf32> to vector<16x1xf32>
    %cst_63 = arith.constant 3.200000e+01 : f32
    %204 = vector.broadcast %cst_63 : f32 to vector<16x1xf32>
    %205 = arith.divf %203, %204 : vector<16x1xf32>
    %206 = vector.broadcast %205 : vector<16x1xf32> to vector<16x32xf32>
    %207 = arith.subf %201, %206 : vector<16x32xf32>
    %208 = arith.mulf %207, %207 : vector<16x32xf32>
    %cst_64 = arith.constant dense<0.000000e+00> : vector<16xf32>
    %209 = vector.multi_reduction <add>, %208, %cst_64 [1] : vector<16x32xf32> to vector<16xf32>
    %210 = vector.shape_cast %209 : vector<16xf32> to vector<16x1xf32>
    %cst_65 = arith.constant 3.200000e+01 : f32
    %211 = vector.broadcast %cst_65 : f32 to vector<16x1xf32>
    %212 = arith.divf %210, %211 : vector<16x1xf32>
    %cst_66 = arith.constant 9.99999974E-6 : f32
    %213 = vector.broadcast %cst_66 : f32 to vector<16x1xf32>
    %214 = arith.addf %212, %213 : vector<16x1xf32>
    %215 = math.rsqrt %214 : vector<16x1xf32>
    %216 = vector.broadcast %215 : vector<16x1xf32> to vector<16x32xf32>
    %217 = arith.mulf %207, %216 : vector<16x32xf32>
    %218 = vector.broadcast %156 : vector<1x32xf32> to vector<16x32xf32>
    %219 = arith.mulf %217, %218 : vector<16x32xf32>
    %220 = vector.broadcast %157 : vector<1x32xf32> to vector<16x32xf32>
    %221 = arith.addf %219, %220 : vector<16x32xf32>
    %c32_67 = arith.constant 32 : index
    %c0_68 = arith.constant 0 : index
    %222 = vector.load %arg3[%c32_67, %c0_68] : memref<66x128xbf16, #tpu.memory_space<vmem>>, vector<32x128xbf16>
    %c65 = arith.constant 65 : index
    %c0_69 = arith.constant 0 : index
    %223 = vector.load %arg3[%c65, %c0_69] : memref<66x128xbf16, #tpu.memory_space<vmem>>, vector<1x128xbf16>
    %224 = arith.truncf %221 : vector<16x32xf32> to vector<16x32xbf16>
    %cst_70 = arith.constant dense<0.000000e+00> : vector<16x128xf32>
    %225 = tpu.matmul %224, %222, %cst_70 {dimension_numbers = #tpu.dot_dimension_numbers<[1], [0], [0], [1], [0, 0, 1, 1], [], []>} : vector<16x32xbf16>, vector<32x128xbf16>, vector<16x128xf32> -> vector<16x128xf32>
    %226 = arith.extf %223 : vector<1x128xbf16> to vector<1x128xf32>
    %227 = vector.broadcast %226 : vector<1x128xf32> to vector<16x128xf32>
    %228 = arith.addf %225, %227 : vector<16x128xf32>
    %cst_71 = arith.constant 5.000000e-01 : f32
    %229 = vector.broadcast %cst_71 : f32 to vector<16x128xf32>
    %230 = arith.mulf %229, %228 : vector<16x128xf32>
    %231 = arith.mulf %228, %228 : vector<16x128xf32>
    %232 = arith.mulf %231, %228 : vector<16x128xf32>
    %cst_72 = arith.constant 4.471500e-02 : f32
    %233 = vector.broadcast %cst_72 : f32 to vector<16x128xf32>
    %234 = arith.mulf %233, %232 : vector<16x128xf32>
    %235 = arith.addf %228, %234 : vector<16x128xf32>
    %cst_73 = arith.constant 0.797884583 : f32
    %236 = vector.broadcast %cst_73 : f32 to vector<16x128xf32>
    %237 = arith.mulf %236, %235 : vector<16x128xf32>
    %238 = math.tanh %237 : vector<16x128xf32>
    %cst_74 = arith.constant 1.000000e+00 : f32
    %239 = vector.broadcast %cst_74 : f32 to vector<16x128xf32>
    %240 = arith.addf %239, %238 : vector<16x128xf32>
    %241 = arith.mulf %230, %240 : vector<16x128xf32>
    %242 = arith.truncf %241 : vector<16x128xf32> to vector<16x128xbf16>
    %cst_75 = arith.constant dense<0.000000e+00> : vector<16x32xf32>
    %243 = tpu.matmul %242, %150, %cst_75 {dimension_numbers = #tpu.dot_dimension_numbers<[1], [0], [0], [1], [0, 0, 1, 1], [], []>} : vector<16x128xbf16>, vector<128x32xbf16>, vector<16x32xf32> -> vector<16x32xf32>
    %244 = vector.broadcast %160 : vector<1x32xf32> to vector<16x32xf32>
    %245 = arith.addf %243, %244 : vector<16x32xf32>
    %246 = arith.addf %245, %221 : vector<16x32xf32>
    %cst_76 = arith.constant dense<0.000000e+00> : vector<16xf32>
    %247 = vector.multi_reduction <add>, %246, %cst_76 [1] : vector<16x32xf32> to vector<16xf32>
    %248 = vector.shape_cast %247 : vector<16xf32> to vector<16x1xf32>
    %cst_77 = arith.constant 3.200000e+01 : f32
    %249 = vector.broadcast %cst_77 : f32 to vector<16x1xf32>
    %250 = arith.divf %248, %249 : vector<16x1xf32>
    %251 = vector.broadcast %250 : vector<16x1xf32> to vector<16x32xf32>
    %252 = arith.subf %246, %251 : vector<16x32xf32>
    %253 = arith.mulf %252, %252 : vector<16x32xf32>
    %cst_78 = arith.constant dense<0.000000e+00> : vector<16xf32>
    %254 = vector.multi_reduction <add>, %253, %cst_78 [1] : vector<16x32xf32> to vector<16xf32>
    %255 = vector.shape_cast %254 : vector<16xf32> to vector<16x1xf32>
    %cst_79 = arith.constant 3.200000e+01 : f32
    %256 = vector.broadcast %cst_79 : f32 to vector<16x1xf32>
    %257 = arith.divf %255, %256 : vector<16x1xf32>
    %cst_80 = arith.constant 9.99999974E-6 : f32
    %258 = vector.broadcast %cst_80 : f32 to vector<16x1xf32>
    %259 = arith.addf %257, %258 : vector<16x1xf32>
    %260 = math.rsqrt %259 : vector<16x1xf32>
    %261 = vector.broadcast %260 : vector<16x1xf32> to vector<16x32xf32>
    %262 = arith.mulf %252, %261 : vector<16x32xf32>
    %263 = vector.broadcast %158 : vector<1x32xf32> to vector<16x32xf32>
    %264 = arith.mulf %262, %263 : vector<16x32xf32>
    %265 = vector.broadcast %159 : vector<1x32xf32> to vector<16x32xf32>
    %266 = arith.addf %264, %265 : vector<16x32xf32>
    %267 = vector.shape_cast %266 : vector<16x32xf32> to vector<2x8x32xf32>
    %cst_81 = arith.constant dense<0.000000e+00> : vector<2x32xf32>
    %268 = vector.multi_reduction <add>, %267, %cst_81 [1] : vector<2x8x32xf32> to vector<2x32xf32>
    %cst_82 = arith.constant 8.000000e+00 : f32
    %269 = vector.broadcast %cst_82 : f32 to vector<2x32xf32>
    %270 = arith.divf %268, %269 : vector<2x32xf32>
    %c552 = arith.constant 552 : index
    %c0_83 = arith.constant 0 : index
    %271 = vector.load %arg2[%c552, %c0_83] : memref<584x32xbf16, #tpu.memory_space<vmem>>, vector<32x32xbf16>
    %c60 = arith.constant 60 : index
    %c0_84 = arith.constant 0 : index
    %272 = vector.load %arg4[%c60, %c0_84] : memref<63x32xf32, #tpu.memory_space<vmem>>, vector<1x32xf32>
    %c61 = arith.constant 61 : index
    %c0_85 = arith.constant 0 : index
    %273 = vector.load %arg4[%c61, %c0_85] : memref<63x32xf32, #tpu.memory_space<vmem>>, vector<1x32xf32>
    %c62 = arith.constant 62 : index
    %c0_86 = arith.constant 0 : index
    %274 = vector.load %arg4[%c62, %c0_86] : memref<63x32xf32, #tpu.memory_space<vmem>>, vector<1x32xf32>
    %275 = arith.truncf %270 : vector<2x32xf32> to vector<2x32xbf16>
    %cst_87 = arith.constant dense<0.000000e+00> : vector<2x32xf32>
    %276 = tpu.matmul %275, %271, %cst_87 {dimension_numbers = #tpu.dot_dimension_numbers<[1], [0], [0], [1], [0, 0, 1, 1], [], []>} : vector<2x32xbf16>, vector<32x32xbf16>, vector<2x32xf32> -> vector<2x32xf32>
    %277 = vector.broadcast %272 : vector<1x32xf32> to vector<2x32xf32>
    %278 = arith.addf %276, %277 : vector<2x32xf32>
    %cst_88 = arith.constant 0.000000e+00 : f32
    %279 = vector.broadcast %cst_88 : f32 to vector<2x32xf32>
    %280 = arith.maximumf %278, %279 : vector<2x32xf32>
    %281 = vector.broadcast %273 : vector<1x32xf32> to vector<2x32xf32>
    %282 = arith.mulf %280, %281 : vector<2x32xf32>
    %cst_89 = arith.constant dense<0.000000e+00> : vector<2xf32>
    %283 = vector.multi_reduction <add>, %282, %cst_89 [1] : vector<2x32xf32> to vector<2xf32>
    %284 = vector.shape_cast %283 : vector<2xf32> to vector<2x1xf32>
    %285 = vector.extract_strided_slice %274 {offsets = [0, 0], sizes = [1, 1], strides = [1, 1]} : vector<1x32xf32> to vector<1x1xf32>
    %286 = vector.broadcast %285 : vector<1x1xf32> to vector<2x1xf32>
    %287 = arith.addf %284, %286 : vector<2x1xf32>
    %288 = vector.shape_cast %287 : vector<2x1xf32> to vector<2x1xf32>
    %289 = vector.broadcast %288 : vector<2x1xf32> to vector<2x128xf32>
    %290 = vector.shape_cast %289 : vector<2x128xf32> to vector<1x2x128xf32>
    %c0_90 = arith.constant 0 : index
    %c0_91 = arith.constant 0 : index
    %c0_92 = arith.constant 0 : index
    %291 = vector.load %arg5[%c0_90, %c0_91, %c0_92] : memref<1x2x128xf32, #tpu.memory_space<vmem>>, vector<1x2x128xf32>
    tpu.vector_store %arg5[%c0_90, %c0_91, %c0_92], %290 {strides = array<i32>} : memref<1x2x128xf32, #tpu.memory_space<vmem>>, vector<1x2x128xf32>,
    return
  }
  func.func @transform_0(%arg0: i32) -> (i32, i32, i32, i32) {
    %c0_i32 = arith.constant 0 : i32
    %c0_i32_0 = arith.constant 0 : i32
    %c0_i32_1 = arith.constant 0 : i32
    %c0_i32_2 = arith.constant 0 : i32
    return %arg0, %c0_i32, %c0_i32_0, %c0_i32_1 : i32, i32, i32, i32
  }
  func.func @transform_1(%arg0: i32) -> (i32, i32) {
    %c0_i32 = arith.constant 0 : i32
    %c0_i32_0 = arith.constant 0 : i32
    %c0_i32_1 = arith.constant 0 : i32
    return %c0_i32, %c0_i32_0 : i32, i32
  }
  func.func @transform_2(%arg0: i32) -> (i32, i32) {
    %c0_i32 = arith.constant 0 : i32
    %c0_i32_0 = arith.constant 0 : i32
    %c0_i32_1 = arith.constant 0 : i32
    return %c0_i32, %c0_i32_0 : i32, i32
  }
  func.func @transform_3(%arg0: i32) -> (i32, i32) {
    %c0_i32 = arith.constant 0 : i32
    %c0_i32_0 = arith.constant 0 : i32
    %c0_i32_1 = arith.constant 0 : i32
    return %c0_i32, %c0_i32_0 : i32, i32
  }
  func.func @transform_4(%arg0: i32) -> (i32, i32, i32) {
    %c0_i32 = arith.constant 0 : i32
    %c0_i32_0 = arith.constant 0 : i32
    %c0_i32_1 = arith.constant 0 : i32
    return %arg0, %c0_i32, %c0_i32_0 : i32, i32, i32
  }
}

</mosaic_0001>

<llo_original>
// kernel: _lambda_.1
$region0: #{_lambda_.1}
  #allocation0 [shape = 'u32[]', space=smem, size = 0x4, offset = 0x4, fixed_abs, tag = 'smem constant byte address 0x4 - core index']
  #allocation1 [shape = 'u32[72,128]{1,0:T(1,128)}', space=vmem, size = 0x9000, scoped, tag = 'internal scratch']
  %s0 = inlined_call_operand.vmem [shape: f32[1,2,8,4], index: 0, kind: input, shape index: {}]
  %s1 = inlined_call_operand.hbm [shape: bf16[584,32], index: 1, kind: input, shape index: {}]
  %s2 = inlined_call_operand.hbm [shape: bf16[66,128], index: 2, kind: input, shape index: {}]
  %s3 = inlined_call_operand.hbm [shape: f32[63,32], index: 3, kind: input, shape index: {}]
  %s4 = inlined_call_operand.vmem [shape: f32[1,2,128], index: 4, kind: output, shape index: {}]
  %s5 = sld [smem:[#allocation0]]
  $region38: #{_lambda_.1} parent=0
    _
  %s7 = ssub.s32 1, %s5
  %s8 = scalar_select 0, %s7, %s5
  $region1: #{_lambda_.1} parent=0
    #allocation2 [shape = 'u8[149504]{0}', space=vmem, size = 0x24800, scoped, tag = 'input window, operand 1, single buffered']
    #allocation3 [shape = 's32[1]{0}', space=sflag, size = 0x4, scoped, tag = 'scoped memory for _lambda_.1']
    #allocation4 [shape = 'u8[18432]{0}', space=vmem, size = 0x4800, scoped, tag = 'input window, operand 2, single buffered']
    #allocation5 [shape = 's32[1]{0}', space=sflag, size = 0x4, scoped, tag = 'scoped memory for _lambda_.1']
    #allocation6 [shape = 'u8[32768]{0}', space=vmem, size = 0x8000, scoped, tag = 'input window, operand 3, single buffered']
    %9 = vsyncpa [#allocation3], 0
    %10 = vsyncpa [#allocation5], 0
    // Predicated region
    $region2: #{_lambda_.1} parent=1 // pred_check
      _
    $region3: #{_lambda_.1} parent=1 // pred_check_branch
      %12 = sbr.rel (0) target = $region5
    $region4: #{_lambda_.1} parent=1 // pred_region
      _
    $region5: #{_lambda_.1} parent=1 // pred_fallthru
      _
    // Predicated region
    $region6: #{_lambda_.1} parent=1 // pred_check
      _
    $region7: #{_lambda_.1} parent=1 // pred_check_branch
      %14 = sbr.rel (0) target = $region9
    $region8: #{_lambda_.1} parent=1 // pred_region
      %16 = vsyncadd [#allocation3], 0
      %s17 = sshll.u32 %s1, 4
      %s18 = int_to_ptr.hbm [resolvable:$true] %s17
      %s19 = sshll.u32 [#allocation2], 4
      %s20 = int_to_ptr.vmem [resolvable:$true] %s19
      %25 = dma.hbm_to_vmem [thread:$0]  %s18, 4672, %s20, [#allocation3], 64, 64, 4
    $region9: #{_lambda_.1} parent=1 // pred_fallthru
      _
    // Predicated region
    $region10: #{_lambda_.1} parent=1 // pred_check
      _
    $region11: #{_lambda_.1} parent=1 // pred_check_branch
      %27 = sbr.rel (0) target = $region13
    $region12: #{_lambda_.1} parent=1 // pred_region
      %29 = vsyncadd [#allocation5], 0
      %s30 = sshll.u32 %s2, 4
      %s31 = int_to_ptr.hbm [resolvable:$true] %s30
      %s32 = sshll.u32 [#allocation4], 4
      %s33 = int_to_ptr.vmem [resolvable:$true] %s32
      %38 = dma.hbm_to_vmem [thread:$0]  %s31, 576, %s33, [#allocation5], 64, 64, 4
    $region13: #{_lambda_.1} parent=1 // pred_fallthru
      _
    // Predicated region
    $region14: #{_lambda_.1} parent=1 // pred_check
      _
    $region15: #{_lambda_.1} parent=1 // pred_check_branch
      %40 = sbr.rel (0) target = $region17
    $region16: #{_lambda_.1} parent=1 // pred_region
      %42 = vsyncadd [#allocation5], 0
      %s43 = sshll.u32 %s3, 4
      %s44 = int_to_ptr.hbm [resolvable:$true] %s43
      %s45 = sshll.u32 [#allocation6], 4
      %s46 = int_to_ptr.vmem [resolvable:$true] %s45
      %51 = dma.hbm_to_vmem [thread:$0]  %s44, 1024, %s46, [#allocation5], 128, 128, 8
    $region17: #{_lambda_.1} parent=1 // pred_fallthru
      _
    // Predicated region
    $region18: #{_lambda_.1} parent=1 // pred_check
      _
    $region19: #{_lambda_.1} parent=1 // pred_check_branch
      %53 = sbr.rel (0) target = $region21
    $region20: #{_lambda_.1} parent=1 // pred_region
      %55 = dma.done [#allocation3], 4672
    $region21: #{_lambda_.1} parent=1 // pred_fallthru
      _
    // Predicated region
    $region22: #{_lambda_.1} parent=1 // pred_check
      _
    $region23: #{_lambda_.1} parent=1 // pred_check_branch
      %57 = sbr.rel (0) target = $region25
    $region24: #{_lambda_.1} parent=1 // pred_region
      %59 = dma.done [#allocation5], 576
    $region25: #{_lambda_.1} parent=1 // pred_fallthru
      _
    // Predicated region
    $region26: #{_lambda_.1} parent=1 // pred_check
      _
    $region27: #{_lambda_.1} parent=1 // pred_check_branch
      %61 = sbr.rel (0) target = $region29
    $region28: #{_lambda_.1} parent=1 // pred_region
      %63 = dma.done [#allocation5], 1024
    $region29: #{_lambda_.1} parent=1 // pred_fallthru
      _
    %v65 = vld [vmem:[#allocation6] sm:$0xff]
    %v66 = vld [vmem:[#allocation6 + $0x8] sm:$0xff]
    %v67 = vld [vmem:[#allocation6 + $0x10] sm:$0xff]
    %v68 = vld [vmem:[#allocation6 + $0x18] sm:$0xff]
    %v69 = vld [vmem:[#allocation6 + $0x20] sm:$0xff]
    %v70 = vld [vmem:[#allocation6 + $0x28] sm:$0x1]
    %v71 = vld [vmem:[#allocation6 + $0x29] sm:$0x1]
    %v72 = vld [vmem:[%s0] sm:$0xff]
    %v73 = vld [vmem:[%s0 + $0x8] sm:$0xff]
    %v74 = vpack.c.bf16 %v73, %v72
    %v75 = vld [vmem:[#allocation2] sm:$0x3]
    %v76 = vld [vmem:[#allocation2] sm:$0xc]
    %v77 = vld [vmem:[#allocation2 + $0x4] sm:$0xf]
    %v78 = vld [vmem:[#allocation2 + $0x8] sm:$0xf]
    %v79 = vld [vmem:[#allocation2 + $0xc] sm:$0xf]
    %v80 = vld [vmem:[#allocation2 + $0x10] sm:$0xf]
    %v81 = vperm.slane %v70, 0
    %v83 = vunpack.c.l.b16 %v76
    %v84 = vpack.c.b16 %v83, %v83
    %v85 = vrot.slane %v84, 2
    %vm86 = vcmask 31744
    %v88 = vsel %vm86, %v74, 0
    %vm90 = vcmask 1041408
    %v92 = vsel %vm90, %v85, 0
    %94 = vmatpush.bf16.msra.mxu0 0
    %95 = vmatpush.bf16.msra.mxu0 0
    %96 = vmatpush.bf16.msra.mxu0 0
    %97 = vmatpush.bf16.msra.mxu0 0
    %98 = vmatpush.bf16.msra.mxu0 0
    %99 = vmatpush.bf16.msra.mxu0 0
    %100 = vmatpush.bf16.msra.mxu0 0
    %101 = vmatpush.bf16.msra.mxu0 %v92
    %102 = vmatmul.bf16.gmra.mxu0 %v88
    %v103 = vpop.f32.mrf.mxu0
    %v104 = vadd.f32 %v81, %v103
    %v105 = vpop.f32.mrf.mxu0
    %v106 = vadd.f32 %v81, %v105
    %107 = vdwg.mxu0
    %v108 = vand.u32 2147483647, %v104
    %vm109 = vcmp.le.f32.partialorder %v108, 0.7853982
    %vm110 = vcmp.lt.s32.totalorder %v104, 0
    %v111 = vand.u32 %v104, 2139095040
    %v112 = vshrl.u32 %v111, 23
    %v113 = vsub.s32 %v112, 127
    %v114 = vand.u32 2147483647, %v104
    %v115 = vand.u32 %v114, 8388607
    %v116 = vor.u32 %v115, 8388608
    %v117 = vsub.s32 0, %v116
    %v118 = vadd.s32 %v113, 1
    %vm119 = vcmp.gt.s32.totalorder %v118, 0
    %v120 = vsel %vm119, %v118, 0
    %v121 = vshrl.u32 %v120, 5
    %v122 = vand.u32 %v120, 31
    %v123 = vsub.s32 32, %v122
    %v124 = vshrl.u32 683565275, %v123
    %v125 = vshll.u32 683565275, %v122
    %v126 = vshrl.u32 2475754826, %v123
    %v127 = vor.u32 %v125, %v126
    %v128 = vshll.u32 2475754826, %v122
    %v129 = vshrl.u32 2131351028, %v123
    %v130 = vor.u32 %v128, %v129
    %v131 = vshll.u32 2131351028, %v122
    %v132 = vshrl.u32 2102212464, %v123
    %v133 = vor.u32 %v131, %v132
    %v134 = vshll.u32 2102212464, %v122
    %v135 = vshrl.u32 920167782, %v123
    %v136 = vor.u32 %v134, %v135
    %v137 = vshll.u32 920167782, %v122
    %v138 = vshrl.u32 1326507024, %v123
    %v139 = vor.u32 %v137, %v138
    %vm140 = vcmp.lt.s32.totalorder %v121, 1
    %vm141 = vcmp.lt.s32.totalorder %v121, 2
    %vm142 = vcmp.lt.s32.totalorder %v121, 3
    %vm143 = vcmp.lt.s32.totalorder %v121, 4
    %v144 = vsel %vm140, %v124, %v127
    %v145 = vsel %vm143, %v133, 2102212464
    %v146 = vsel %vm142, %v130, %v145
    %v147 = vsel %vm141, %v144, %v146
    %v148 = vsel %vm140, %v127, %v130
    %v149 = vsel %vm143, %v136, 920167782
    %v150 = vsel %vm142, %v133, %v149
    %v151 = vsel %vm141, %v148, %v150
    %v152 = vsel %vm140, %v130, %v133
    %v153 = vsel %vm143, %v139, 1326507024
    %v154 = vsel %vm142, %v136, %v153
    %v155 = vsel %vm141, %v152, %v154
    %v156 = vshll.u32 %v116, 8
    %v157 = vand.u32 %v156, 65535
    %v158 = vshrl.u32 %v156, 16
    %v159 = vand.u32 %v155, 65535
    %v160 = vshrl.u32 %v155, 16
    %v161 = vmul.u32 %v157, %v159
    %v162 = vmul.u32 %v157, %v160
    %v163 = vmul.u32 %v158, %v159
    %v164 = vmul.u32 %v158, %v160
    %v165 = vshll.u32 %v162, 16
    %v166 = vshrl.u32 %v162, 16
    %v167 = vshll.u32 %v163, 16
    %v168 = vshrl.u32 %v163, 16
    %vm169 = vc.u32 %v161, %v165
    %v170 = vsel %vm169, 1, 0
    %v171 = vadd.s32 %v161, %v165
    %v172 = vadd.s32 %v164, %v170
    %vm173 = vc.u32 %v171, %v167
    %v174 = vsel %vm173, 1, 0
    %v175 = vadd.s32 %v171, %v167
    %v176 = vadd.s32 %v172, %v174
    %v177 = vadd.s32 %v176, %v166
    %v178 = vadd.s32 %v177, %v168
    %v179 = vand.u32 %v156, 65535
    %v180 = vshrl.u32 %v156, 16
    %v181 = vand.u32 %v151, 65535
    %v182 = vshrl.u32 %v151, 16
    %v183 = vmul.u32 %v179, %v181
    %v184 = vmul.u32 %v179, %v182
    %v185 = vmul.u32 %v180, %v181
    %v186 = vmul.u32 %v180, %v182
    %v187 = vshll.u32 %v184, 16
    %v188 = vshrl.u32 %v184, 16
    %v189 = vshll.u32 %v185, 16
    %v190 = vshrl.u32 %v185, 16
    %vm191 = vc.u32 %v183, %v187
    %v192 = vsel %vm191, 1, 0
    %v193 = vadd.s32 %v183, %v187
    %v194 = vadd.s32 %v186, %v192
    %vm195 = vc.u32 %v193, %v189
    %v196 = vsel %vm195, 1, 0
    %v197 = vadd.s32 %v193, %v189
    %v198 = vadd.s32 %v194, %v196
    %v199 = vadd.s32 %v198, %v188
    %v200 = vadd.s32 %v199, %v190
    %v201 = vmul.u32 %v156, %v147
    %v202 = vadd.s32 %v178, %v197
    %vm203 = vc.u32 %v178, %v197
    %v204 = vadd.s32 %v200, 1
    %v205 = vsel %vm203, %v204, %v200
    %v206 = vadd.s32 %v201, %v205
    %v207 = vadd.s32 %v206, 536870912
    %v208 = vshrl.u32 %v207, 30
    %v209 = vshll.u32 %v208, 30
    %v210 = vsub.s32 %v206, %v209
    %vm211 = vcmp.lt.s32.totalorder %v210, 0
    %v212 = vsub.s32 0, %v210
    %v213 = vsel %vm211, %v212, %v210
    %v214 = vclz %v213
    %v215 = vsub.s32 %v214, 2
    %vm216 = vcmp.gt.s32.totalorder 0, %v215
    %v217 = vsel %vm216, 0, %v215
    %v218 = vsub.s32 32, %v217
    %v219 = vshll.u32 %v210, %v217
    %v220 = vshrl.u32 %v202, %v218
    %v221 = vor.u32 %v219, %v220
    %v222 = vsub.s32 4294967266, %v217
    %v223 = vadd.s32 %v222, 127
    %v224 = vshll.u32 %v223, 23
    %v225 = vor.u32 4788187, %v224
    %v226 = vand.u32 2147483647, %v225
    %v228 = vcvt.s32.f32 %v221
    %v229 = vmul.f32 %v228, %v226
    %v230 = vxor.u32 %v229, 2147483648
    %v231 = vsel %vm110, %v230, %v229
    %v232 = vsub.s32 4, %v208
    %v233 = vsel %vm110, %v232, %v208
    %v234 = vsel %vm109, %v104, %v231
    %v235 = vsel %vm109, 0, %v233
    %v236 = vmul.f32 %v234, %v234
    %v237 = vmul.f32 %v236, -0.001358992
    %v238 = vadd.f32 %v237, 0.041655596
    %v239 = vmul.f32 %v236, %v238
    %v240 = vadd.f32 %v239, -0.4999988
    %v241 = vmul.f32 %v236, %v240
    %v242 = vadd.f32 1.0, %v241
    %v243 = vmul.f32 %v234, %v234
    %v244 = vmul.f32 %v243, -0.00019511016
    %v245 = vadd.f32 %v244, 0.008332121
    %v246 = vmul.f32 %v243, %v245
    %v247 = vadd.f32 %v246, -0.16666654
    %v248 = vmul.f32 %v243, %v247
    %v249 = vadd.f32 %v248, 1.0
    %v250 = vmul.f32 %v249, %v234
    %vm251 = vweird.f32 %v104
    %v252 = vadd.s32 %v235, 3
    %v253 = vand.u32 %v252, 3
    %vm254 = vcmp.lt.s32.totalorder %v253, 2
    %vm255 = vcmp.eq.s32.totalorder %v253, 0
    %v256 = vxor.u32 %v250, 2147483648
    %v257 = vsel %vm255, %v242, %v256
    %vm258 = vcmp.eq.s32.totalorder %v253, 2
    %v259 = vxor.u32 %v242, 2147483648
    %v260 = vsel %vm258, %v259, %v250
    %v261 = vsel %vm254, %v257, %v260
    %v262 = vsel %vm251, nan, %v261
    %v263 = vand.u32 2147483647, %v106
    %vm264 = vcmp.le.f32.partialorder %v263, 0.7853982
    %vm265 = vcmp.lt.s32.totalorder %v106, 0
    %v266 = vand.u32 %v106, 2139095040
    %v267 = vshrl.u32 %v266, 23
    %v268 = vsub.s32 %v267, 127
    %v269 = vand.u32 2147483647, %v106
    %v270 = vand.u32 %v269, 8388607
    %v271 = vor.u32 %v270, 8388608
    %v272 = vsub.s32 0, %v271
    %v273 = vadd.s32 %v268, 1
    %vm274 = vcmp.gt.s32.totalorder %v273, 0
    %v275 = vsel %vm274, %v273, 0
    %v276 = vshrl.u32 %v275, 5
    %v277 = vand.u32 %v275, 31
    %v278 = vsub.s32 32, %v277
    %v279 = vshrl.u32 683565275, %v278
    %v280 = vshll.u32 683565275, %v277
    %v281 = vshrl.u32 2475754826, %v278
    %v282 = vor.u32 %v280, %v281
    %v283 = vshll.u32 2475754826, %v277
    %v284 = vshrl.u32 2131351028, %v278
    %v285 = vor.u32 %v283, %v284
    %v286 = vshll.u32 2131351028, %v277
    %v287 = vshrl.u32 2102212464, %v278
    %v288 = vor.u32 %v286, %v287
    %v289 = vshll.u32 2102212464, %v277
    %v290 = vshrl.u32 920167782, %v278
    %v291 = vor.u32 %v289, %v290
    %v292 = vshll.u32 920167782, %v277
    %v293 = vshrl.u32 1326507024, %v278
    %v294 = vor.u32 %v292, %v293
    %vm295 = vcmp.lt.s32.totalorder %v276, 1
    %vm296 = vcmp.lt.s32.totalorder %v276, 2
    %vm297 = vcmp.lt.s32.totalorder %v276, 3
    %vm298 = vcmp.lt.s32.totalorder %v276, 4
    %v299 = vsel %vm295, %v279, %v282
    %v300 = vsel %vm298, %v288, 2102212464
    %v301 = vsel %vm297, %v285, %v300
    %v302 = vsel %vm296, %v299, %v301
    %v303 = vsel %vm295, %v282, %v285
    %v304 = vsel %vm298, %v291, 920167782
    %v305 = vsel %vm297, %v288, %v304
    %v306 = vsel %vm296, %v303, %v305
    %v307 = vsel %vm295, %v285, %v288
    %v308 = vsel %vm298, %v294, 1326507024
    %v309 = vsel %vm297, %v291, %v308
    %v310 = vsel %vm296, %v307, %v309
    %v311 = vshll.u32 %v271, 8
    %v312 = vand.u32 %v311, 65535
    %v313 = vshrl.u32 %v311, 16
    %v314 = vand.u32 %v310, 65535
    %v315 = vshrl.u32 %v310, 16
    %v316 = vmul.u32 %v312, %v314
    %v317 = vmul.u32 %v312, %v315
    %v318 = vmul.u32 %v313, %v314
    %v319 = vmul.u32 %v313, %v315
    %v320 = vshll.u32 %v317, 16
    %v321 = vshrl.u32 %v317, 16
    %v322 = vshll.u32 %v318, 16
    %v323 = vshrl.u32 %v318, 16
    %vm324 = vc.u32 %v316, %v320
    %v325 = vsel %vm324, 1, 0
    %v326 = vadd.s32 %v316, %v320
    %v327 = vadd.s32 %v319, %v325
    %vm328 = vc.u32 %v326, %v322
    %v329 = vsel %vm328, 1, 0
    %v330 = vadd.s32 %v326, %v322
    %v331 = vadd.s32 %v327, %v329
    %v332 = vadd.s32 %v331, %v321
    %v333 = vadd.s32 %v332, %v323
    %v334 = vand.u32 %v311, 65535
    %v335 = vshrl.u32 %v311, 16
    %v336 = vand.u32 %v306, 65535
    %v337 = vshrl.u32 %v306, 16
    %v338 = vmul.u32 %v334, %v336
    %v339 = vmul.u32 %v334, %v337
    %v340 = vmul.u32 %v335, %v336
    %v341 = vmul.u32 %v335, %v337
    %v342 = vshll.u32 %v339, 16
    %v343 = vshrl.u32 %v339, 16
    %v344 = vshll.u32 %v340, 16
    %v345 = vshrl.u32 %v340, 16
    %vm346 = vc.u32 %v338, %v342
    %v347 = vsel %vm346, 1, 0
    %v348 = vadd.s32 %v338, %v342
    %v349 = vadd.s32 %v341, %v347
    %vm350 = vc.u32 %v348, %v344
    %v351 = vsel %vm350, 1, 0
    %v352 = vadd.s32 %v348, %v344
    %v353 = vadd.s32 %v349, %v351
    %v354 = vadd.s32 %v353, %v343
    %v355 = vadd.s32 %v354, %v345
    %v356 = vmul.u32 %v311, %v302
    %v357 = vadd.s32 %v333, %v352
    %vm358 = vc.u32 %v333, %v352
    %v359 = vadd.s32 %v355, 1
    %v360 = vsel %vm358, %v359, %v355
    %v361 = vadd.s32 %v356, %v360
    %v362 = vadd.s32 %v361, 536870912
    %v363 = vshrl.u32 %v362, 30
    %v364 = vshll.u32 %v363, 30
    %v365 = vsub.s32 %v361, %v364
    %vm366 = vcmp.lt.s32.totalorder %v365, 0
    %v367 = vsub.s32 0, %v365
    %v368 = vsel %vm366, %v367, %v365
    %v369 = vclz %v368
    %v370 = vsub.s32 %v369, 2
    %vm371 = vcmp.gt.s32.totalorder 0, %v370
    %v372 = vsel %vm371, 0, %v370
    %v373 = vsub.s32 32, %v372
    %v374 = vshll.u32 %v365, %v372
    %v375 = vshrl.u32 %v357, %v373
    %v376 = vor.u32 %v374, %v375
    %v377 = vsub.s32 4294967266, %v372
    %v378 = vadd.s32 %v377, 127
    %v379 = vshll.u32 %v378, 23
    %v380 = vor.u32 4788187, %v379
    %v381 = vand.u32 2147483647, %v380
    %v383 = vcvt.s32.f32 %v376
    %v384 = vmul.f32 %v383, %v381
    %v385 = vxor.u32 %v384, 2147483648
    %v386 = vsel %vm265, %v385, %v384
    %v387 = vsub.s32 4, %v363
    %v388 = vsel %vm265, %v387, %v363
    %v389 = vsel %vm264, %v106, %v386
    %v390 = vsel %vm264, 0, %v388
    %v391 = vmul.f32 %v389, %v389
    %v392 = vmul.f32 %v391, -0.001358992
    %v393 = vadd.f32 %v392, 0.041655596
    %v394 = vmul.f32 %v391, %v393
    %v395 = vadd.f32 %v394, -0.4999988
    %v396 = vmul.f32 %v391, %v395
    %v397 = vadd.f32 1.0, %v396
    %v398 = vmul.f32 %v389, %v389
    %v399 = vmul.f32 %v398, -0.00019511016
    %v400 = vadd.f32 %v399, 0.008332121
    %v401 = vmul.f32 %v398, %v400
    %v402 = vadd.f32 %v401, -0.16666654
    %v403 = vmul.f32 %v398, %v402
    %v404 = vadd.f32 %v403, 1.0
    %v405 = vmul.f32 %v404, %v389
    %vm406 = vweird.f32 %v106
    %v407 = vadd.s32 %v390, 3
    %v408 = vand.u32 %v407, 3
    %vm409 = vcmp.lt.s32.totalorder %v408, 2
    %vm410 = vcmp.eq.s32.totalorder %v408, 0
    %v411 = vxor.u32 %v405, 2147483648
    %v412 = vsel %vm410, %v397, %v411
    %vm413 = vcmp.eq.s32.totalorder %v408, 2
    %v414 = vxor.u32 %v397, 2147483648
    %v415 = vsel %vm413, %v414, %v405
    %v416 = vsel %vm409, %v412, %v415
    %v417 = vsel %vm406, nan, %v416
    %v418 = vpack.c.bf16 %v417, %v262
    %v423 = vunpack.c.l.b16 %v77
    %v424 = vunpack.c.l.b16 %v78
    %v425 = vunpack.c.l.b16 %v79
    %v426 = vunpack.c.l.b16 %v80
    %v427 = vpack.c.b16 %v424, %v423
    %v428 = vpack.c.b16 %v426, %v425
    %vm431 = vcmask 261120
    %v433 = vsel %vm431, %v418, 0
    %435 = vmatpush.bf16.msra.mxu0 0
    %436 = vmatpush.bf16.msra.mxu0 0
    %437 = vmatpush.bf16.msra.mxu0 0
    %438 = vmatpush.bf16.msra.mxu0 0
    %439 = vmatpush.bf16.msra.mxu0 0
    %440 = vmatpush.bf16.msra.mxu0 0
    %441 = vmatpush.bf16.msra.mxu0 %v428
    %442 = vmatpush.bf16.msra.mxu0 %v427
    %443 = vmatmul.bf16.gmra.mxu0 %v433
    %v444 = vpop.f32.mrf.mxu0
    %v445 = vadd.f32 0.0, %v444
    %v446 = vpop.f32.mrf.mxu0
    %v447 = vadd.f32 0.0, %v446
    %448 = vdwg.mxu0
    %v450 = vsel %vm90, %v75, 0
    %452 = vmatpush.bf16.msra.mxu0 0
    %453 = vmatpush.bf16.msra.mxu0 0
    %454 = vmatpush.bf16.msra.mxu0 0
    %455 = vmatpush.bf16.msra.mxu0 0
    %456 = vmatpush.bf16.msra.mxu0 0
    %457 = vmatpush.bf16.msra.mxu0 0
    %458 = vmatpush.bf16.msra.mxu0 0
    %459 = vmatpush.bf16.msra.mxu0 %v450
    %460 = vmatmul.bf16.gmra.mxu0 %v88
    %v461 = vpop.f32.mrf.mxu0
    %v462 = vadd.f32 %v445, %v461
    %v463 = vpop.f32.mrf.mxu0
    %v464 = vadd.f32 %v447, %v463
    %465 = vdwg.mxu0
    %v466 = vperm.slane %v71, 0
    %v467 = vadd.f32 %v462, %v466
    %v468 = vadd.f32 %v464, %v466
    %v469 = vadd.f32 %v467, %v69
    %v470 = vadd.f32 %v468, %v69
    %v471 = vld [vmem:[#allocation2 + $0x14] sm:$0xf]
    %v472 = vld [vmem:[#allocation2 + $0x18] sm:$0xf]
    %v473 = vld [vmem:[#allocation2 + $0x1c] sm:$0xf]
    %v474 = vld [vmem:[#allocation2 + $0x20] sm:$0xf]
    %v475 = vld [vmem:[#allocation2 + $0x24] sm:$0xf]
    %v476 = vld [vmem:[#allocation2 + $0x28] sm:$0xf]
    %v477 = vld [vmem:[#allocation2 + $0x2c] sm:$0xf]
    %v478 = vld [vmem:[#allocation2 + $0x30] sm:$0xf]
    %v479 = vld [vmem:[#allocation2 + $0x34] sm:$0xf]
    %v480 = vld [vmem:[#allocation2 + $0x38] sm:$0xf]
    %v481 = vld [vmem:[#allocation2 + $0x3c] sm:$0xf]
    %v482 = vld [vmem:[#allocation2 + $0x40] sm:$0xf]
    %v483 = vld [vmem:[#allocation2 + $0x44] sm:$0xf]
    %v484 = vld [vmem:[#allocation2 + $0x48] sm:$0xf]
    %v485 = vld [vmem:[#allocation2 + $0x4c] sm:$0xf]
    %v486 = vld [vmem:[#allocation2 + $0x50] sm:$0xf]
    %v487 = vld [vmem:[#allocation2 + $0x54] sm:$0xf]
    %v488 = vld [vmem:[#allocation2 + $0x58] sm:$0xf]
    %v489 = vld [vmem:[#allocation2 + $0x5c] sm:$0xf]
    %v490 = vld [vmem:[#allocation2 + $0x60] sm:$0xf]
    %v491 = vld [vmem:[#allocation2 + $0x64] sm:$0xf]
    %v492 = vld [vmem:[#allocation2 + $0x68] sm:$0xf]
    %v493 = vld [vmem:[#allocation2 + $0x6c] sm:$0xf]
    %v494 = vld [vmem:[#allocation2 + $0x70] sm:$0xf]
    %v495 = vld [vmem:[#allocation2 + $0x74] sm:$0xf]
    %v496 = vld [vmem:[#allocation2 + $0x78] sm:$0xf]
    %v497 = vld [vmem:[#allocation2 + $0x7c] sm:$0xf]
    %v498 = vld [vmem:[#allocation2 + $0x80] sm:$0xf]
    %v499 = vld [vmem:[#allocation2 + $0x84] sm:$0xf]
    %v500 = vld [vmem:[#allocation2 + $0x88] sm:$0xf]
    %v501 = vld [vmem:[#allocation2 + $0x8c] sm:$0xf]
    %v502 = vld [vmem:[#allocation2 + $0x90] sm:$0xf]
    %v503 = vld [vmem:[#allocation6 + $0x2a] sm:$0xff]
    %v504 = vld [vmem:[#allocation6 + $0x32] sm:$0x1]
    %v505 = vpack.c.bf16 %v470, %v469
    %v506 = vperm.slane %v503, 0
    %v511 = vunpack.c.l.b16 %v471
    %v512 = vunpack.c.l.b16 %v472
    %v513 = vunpack.c.l.b16 %v473
    %v514 = vunpack.c.l.b16 %v474
    %v515 = vpack.c.b16 %v512, %v511
    %v516 = vpack.c.b16 %v514, %v513
    %v520 = vsel %vm431, %v505, 0
    %522 = vmatpush.bf16.msra.mxu0 0
    %523 = vmatpush.bf16.msra.mxu0 0
    %524 = vmatpush.bf16.msra.mxu0 0
    %525 = vmatpush.bf16.msra.mxu0 0
    %526 = vmatpush.bf16.msra.mxu0 0
    %527 = vmatpush.bf16.msra.mxu0 0
    %528 = vmatpush.bf16.msra.mxu0 %v516
    %529 = vmatpush.bf16.msra.mxu0 %v515
    %530 = vmatmul.bf16.gmra.mxu0 %v520
    %v531 = vpop.f32.mrf.mxu0
    %v532 = vadd.f32 %v506, %v531
    %v533 = vpop.f32.mrf.mxu0
    %v534 = vadd.f32 %v506, %v533
    %535 = vdwg.mxu0
    %v536 = vperm.slane %v503, 1
    %v541 = vunpack.c.l.b16 %v475
    %v542 = vunpack.c.l.b16 %v476
    %v543 = vunpack.c.l.b16 %v477
    %v544 = vunpack.c.l.b16 %v478
    %v545 = vpack.c.b16 %v542, %v541
    %v546 = vpack.c.b16 %v544, %v543
    %549 = vmatpush.bf16.msra.mxu0 0
    %550 = vmatpush.bf16.msra.mxu0 0
    %551 = vmatpush.bf16.msra.mxu0 0
    %552 = vmatpush.bf16.msra.mxu0 0
    %553 = vmatpush.bf16.msra.mxu0 0
    %554 = vmatpush.bf16.msra.mxu0 0
    %555 = vmatpush.bf16.msra.mxu0 %v546
    %556 = vmatpush.bf16.msra.mxu0 %v545
    %557 = vmatmul.bf16.gmra.mxu0 %v520
    %v558 = vpop.f32.mrf.mxu0
    %v559 = vadd.f32 %v536, %v558
    %v560 = vpop.f32.mrf.mxu0
    %v561 = vadd.f32 %v536, %v560
    %562 = vdwg.mxu0
    %v563 = vperm.slane %v503, 2
    %v568 = vunpack.c.l.b16 %v479
    %v569 = vunpack.c.l.b16 %v480
    %v570 = vunpack.c.l.b16 %v481
    %v571 = vunpack.c.l.b16 %v482
    %v572 = vpack.c.b16 %v569, %v568
    %v573 = vpack.c.b16 %v571, %v570
    %576 = vmatpush.bf16.msra.mxu0 0
    %577 = vmatpush.bf16.msra.mxu0 0
    %578 = vmatpush.bf16.msra.mxu0 0
    %579 = vmatpush.bf16.msra.mxu0 0
    %580 = vmatpush.bf16.msra.mxu0 0
    %581 = vmatpush.bf16.msra.mxu0 0
    %582 = vmatpush.bf16.msra.mxu0 %v573
    %583 = vmatpush.bf16.msra.mxu0 %v572
    %584 = vmatmul.bf16.gmra.mxu0 %v520
    %v585 = vpop.f32.mrf.mxu0
    %v586 = vadd.f32 %v563, %v585
    %v587 = vpop.f32.mrf.mxu0
    %v588 = vadd.f32 %v563, %v587
    %589 = vdwg.mxu0
    %v590 = vmul.f32 %v532, %v559
    %v591 = vmul.f32 %v532, %v561
    %v592 = vmul.f32 %v534, %v559
    %v593 = vmul.f32 %v534, %v561
    %v595 = vsel %vm431, %v590, 0
    %v598 = vsel %vm431, %v591, 0
    %v601 = vsel %vm431, %v592, 0
    %v604 = vsel %vm431, %v593, 0
    %606 = vmatpush.msra.mxu0 0.0
    %607 = vmatpush.msra.mxu0 0.0
    %608 = vmatpush.msra.mxu0 0.0
    %609 = vmatpush.msra.mxu0 0.0
    %610 = vmatpush.msra.mxu0 0.0
    %611 = vmatpush.msra.mxu0 0.0
    %612 = vmatpush.msra.mxu0 0.0
    %613 = vmatpush.msra.mxu0 0.0
    %614 = vmatpush.msra.mxu0 0.0
    %615 = vmatpush.msra.mxu0 0.0
    %616 = vmatpush.msra.mxu0 0.0
    %617 = vmatpush.msra.mxu0 0.0
    %618 = vmatpush.msra.mxu0 %v68
    %619 = vmatpush.msra.mxu0 %v67
    %620 = vmatpush.msra.mxu0 %v66
    %621 = vmatpush.msra.mxu0 %v65
    %622 = vmatmul.f32.gmra.mxu0 %v595
    %v623 = vpop.f32.mrf.mxu0
    %v624 = vadd.f32 0.0, %v623
    %625 = vmatmul.f32.gmra.mxu0 %v598
    %v626 = vpop.f32.mrf.mxu0
    %v627 = vadd.f32 0.0, %v626
    %628 = vmatmul.f32.gmra.mxu0 %v601
    %v629 = vpop.f32.mrf.mxu0
    %v630 = vadd.f32 0.0, %v629
    %631 = vmatmul.f32.gmra.mxu0 %v604
    %v632 = vpop.f32.mrf.mxu0
    %v633 = vadd.f32 0.0, %v632
    %634 = vdwg.mxu0
    %v635 = vsel %vm431, %v624, -inf
    %v636 = vsel %vm431, %v627, -inf
    %v637 = vmax.f32 %v635, %v636
    %v638 = vsel %vm431, %v630, -inf
    %v639 = vsel %vm431, %v633, -inf
    %v640 = vmax.f32 %v638, %v639
    %v641 = vsub.f32 %v624, %v637
    %v642 = vsub.f32 %v627, %v637
    %v643 = vsub.f32 %v630, %v640
    %v644 = vsub.f32 %v633, %v640
    %v645 = vmul.f32 %v641, 1.442695
    %v646 = vpow.pop %v645
    %v647 = vmul.f32 %v642, 1.442695
    %v648 = vpow.pop %v647
    %v649 = vmul.f32 %v643, 1.442695
    %v650 = vpow.pop %v649
    %v651 = vmul.f32 %v644, 1.442695
    %v652 = vpow.pop %v651
    %v653 = vsel %vm431, %v646, 0.0
    %v654 = vsel %vm431, %v648, 0.0
    %v655 = vadd.f32 %v653, %v654
    %v656 = vsel %vm431, %v650, 0.0
    %v657 = vsel %vm431, %v652, 0.0
    %v658 = vadd.f32 %v656, %v657
    %v659 = vrcp.pop %v655
    %v660 = vrcp.pop %v658
    %v661 = vmul.f32 %v646, %v659
    %v662 = vmul.f32 %v648, %v659
    %v663 = vmul.f32 %v650, %v660
    %v664 = vmul.f32 %v652, %v660
    %v665 = vmul.f32 %v661, %v586
    %v666 = vmul.f32 %v662, %v588
    %v667 = vmul.f32 %v663, %v586
    %v668 = vmul.f32 %v664, %v588
    %v669 = vsel %vm431, %v665, 0.0
    %v670 = vsel %vm431, %v666, 0.0
    %v671 = vadd.f32 %v669, %v670
    %v672 = vsel %vm431, %v667, 0.0
    %v673 = vsel %vm431, %v668, 0.0
    %v674 = vadd.f32 %v672, %v673
    %v675 = vpack.c.bf16 %v674, %v671
    %v676 = vperm.slane %v503, 3
    %v681 = vunpack.c.l.b16 %v483
    %v682 = vunpack.c.l.b16 %v484
    %v683 = vunpack.c.l.b16 %v485
    %v684 = vunpack.c.l.b16 %v486
    %v685 = vpack.c.b16 %v682, %v681
    %v686 = vpack.c.b16 %v684, %v683
    %v690 = vsel %vm431, %v675, 0
    %692 = vmatpush.bf16.msra.mxu0 0
    %693 = vmatpush.bf16.msra.mxu0 0
    %694 = vmatpush.bf16.msra.mxu0 0
    %695 = vmatpush.bf16.msra.mxu0 0
    %696 = vmatpush.bf16.msra.mxu0 0
    %697 = vmatpush.bf16.msra.mxu0 0
    %698 = vmatpush.bf16.msra.mxu0 %v686
    %699 = vmatpush.bf16.msra.mxu0 %v685
    %700 = vmatmul.bf16.gmra.mxu0 %v690
    %v701 = vpop.f32.mrf.mxu0
    %v702 = vadd.f32 %v676, %v701
    %v703 = vpop.f32.mrf.mxu0
    %v704 = vadd.f32 %v676, %v703
    %705 = vdwg.mxu0
    %v706 = vadd.f32 %v702, %v469
    %v707 = vadd.f32 %v704, %v470
    %v708 = vsel %vm431, %v706, 0.0
    %709 = vadd.xlane.f32.xlu0 %v708
    %v710 = vpop.xlane.xlu0 %709
    %v711 = vsel %vm431, %v707, 0.0
    %712 = vadd.xlane.f32.xlu0 %v711
    %v713 = vpop.xlane.xlu0 %712
    %v714 = vrcp.pop 32.0
    %v715 = vmul.f32 32.0, %v714
    %v716 = vsub.f32 1.0, %v715
    %v717 = vmul.f32 %v714, %v716
    %v718 = vadd.f32 %v714, %v717
    %vm719 = vweird.f32 %v714
    %v720 = vsel %vm719, %v714, %v718
    %v721 = vmul.f32 %v710, %v720
    %v722 = vmul.f32 %v713, %v720
    %v723 = vsub.f32 %v706, %v721
    %v724 = vsub.f32 %v707, %v722
    %v725 = vmul.f32 %v723, %v723
    %v726 = vmul.f32 %v724, %v724
    %v727 = vsel %vm431, %v725, 0.0
    %728 = vadd.xlane.f32.xlu0 %v727
    %v729 = vpop.xlane.xlu0 %728
    %v730 = vsel %vm431, %v726, 0.0
    %731 = vadd.xlane.f32.xlu0 %v730
    %v732 = vpop.xlane.xlu0 %731
    %v733 = vmul.f32 %v729, %v720
    %v734 = vmul.f32 %v732, %v720
    %v735 = vadd.f32 %v733, 1e-05
    %v736 = vadd.f32 %v734, 1e-05
    %v737 = vrsqrt.pop %v735
    %v738 = vmul.f32 %v737, %v735
    %v739 = vmul.f32 %v738, %v737
    %v740 = vmul.f32 0.5, %v739
    %v741 = vsub.f32 1.5, %v740
    %v742 = vmul.f32 %v737, %v741
    %vm743 = vweird.f32 %v735
    %vm744 = vweird.f32 %v737
    %vm745 = vmor %vm743, %vm744
    %v746 = vsel %vm745, %v737, %v742
    %v747 = vrsqrt.pop %v736
    %v748 = vmul.f32 %v747, %v736
    %v749 = vmul.f32 %v748, %v747
    %v750 = vmul.f32 0.5, %v749
    %v751 = vsub.f32 1.5, %v750
    %v752 = vmul.f32 %v747, %v751
    %vm753 = vweird.f32 %v736
    %vm754 = vweird.f32 %v747
    %vm755 = vmor %vm753, %vm754
    %v756 = vsel %vm755, %v747, %v752
    %v757 = vmul.f32 %v723, %v746
    %v758 = vmul.f32 %v724, %v756
    %v759 = vperm.slane %v503, 4
    %v760 = vmul.f32 %v757, %v759
    %v761 = vmul.f32 %v758, %v759
    %v762 = vperm.slane %v503, 5
    %v763 = vadd.f32 %v760, %v762
    %v764 = vadd.f32 %v761, %v762
    %v765 = vld [vmem:[#allocation4] sm:$0xf]
    %v766 = vld [vmem:[#allocation4 + $0x4] sm:$0xf]
    %v767 = vld [vmem:[#allocation4 + $0x8] sm:$0xf]
    %v768 = vld [vmem:[#allocation4 + $0xc] sm:$0xf]
    %v769 = vld [vmem:[#allocation4 + $0x20] sm:$0x1]
    %v770 = vpack.c.bf16 %v764, %v763
    %v771 = vunpack.c.l.bf16 %v769
    %v772 = vperm.slane %v771, 0
    %v777 = vunpack.c.l.b16 %v765
    %v778 = vunpack.c.l.b16 %v766
    %v779 = vunpack.c.l.b16 %v767
    %v780 = vunpack.c.l.b16 %v768
    %v781 = vpack.c.b16 %v778, %v777
    %v782 = vpack.c.b16 %v780, %v779
    %v786 = vsel %vm431, %v770, 0
    %788 = vmatpush.bf16.msra.mxu0 0
    %789 = vmatpush.bf16.msra.mxu0 0
    %790 = vmatpush.bf16.msra.mxu0 0
    %791 = vmatpush.bf16.msra.mxu0 0
    %792 = vmatpush.bf16.msra.mxu0 0
    %793 = vmatpush.bf16.msra.mxu0 0
    %794 = vmatpush.bf16.msra.mxu0 %v782
    %795 = vmatpush.bf16.msra.mxu0 %v781
    %796 = vmatmul.bf16.gmra.mxu0 %v786
    %v797 = vpop.f32.mrf.mxu0
    %v798 = vadd.f32 %v772, %v797
    %v799 = vpop.f32.mrf.mxu0
    %v800 = vadd.f32 %v772, %v799
    %801 = vdwg.mxu0
    %v802 = vmul.f32 %v798, 0.5
    %v803 = vmul.f32 %v800, 0.5
    %v804 = vmul.f32 %v798, %v798
    %v805 = vmul.f32 %v800, %v800
    %v806 = vmul.f32 %v804, %v798
    %v807 = vmul.f32 %v805, %v800
    %v808 = vmul.f32 %v806, 0.044715
    %v809 = vmul.f32 %v807, 0.044715
    %v810 = vadd.f32 %v798, %v808
    %v811 = vadd.f32 %v800, %v809
    %v812 = vmul.f32 %v810, 0.7978846
    %v813 = vmul.f32 %v811, 0.7978846
    %v814 = vtanh.pop %v812
    %v815 = vtanh.pop %v813
    %v816 = vadd.f32 %v814, 1.0
    %v817 = vadd.f32 %v815, 1.0
    %v818 = vmul.f32 %v802, %v816
    %v819 = vmul.f32 %v803, %v817
    %v820 = vpack.c.bf16 %v819, %v818
    %v821 = vperm.slane %v504, 0
    %v838 = vunpack.c.l.b16 %v487
    %v839 = vunpack.c.l.b16 %v488
    %v840 = vunpack.c.l.b16 %v489
    %v841 = vunpack.c.l.b16 %v490
    %v842 = vunpack.c.l.b16 %v491
    %v843 = vunpack.c.l.b16 %v492
    %v844 = vunpack.c.l.b16 %v493
    %v845 = vunpack.c.l.b16 %v494
    %v846 = vunpack.c.l.b16 %v495
    %v847 = vunpack.c.l.b16 %v496
    %v848 = vunpack.c.l.b16 %v497
    %v849 = vunpack.c.l.b16 %v498
    %v850 = vunpack.c.l.b16 %v499
    %v851 = vunpack.c.l.b16 %v500
    %v852 = vunpack.c.l.b16 %v501
    %v853 = vunpack.c.l.b16 %v502
    %v854 = vpack.c.b16 %v839, %v838
    %v855 = vpack.c.b16 %v841, %v840
    %v856 = vpack.c.b16 %v843, %v842
    %v857 = vpack.c.b16 %v845, %v844
    %v858 = vpack.c.b16 %v847, %v846
    %v859 = vpack.c.b16 %v849, %v848
    %v860 = vpack.c.b16 %v851, %v850
    %v861 = vpack.c.b16 %v853, %v852
    %870 = vmatpush.bf16.msra.mxu0 %v861
    %871 = vmatpush.bf16.msra.mxu0 %v860
    %872 = vmatpush.bf16.msra.mxu0 %v859
    %873 = vmatpush.bf16.msra.mxu0 %v858
    %874 = vmatpush.bf16.msra.mxu0 %v857
    %875 = vmatpush.bf16.msra.mxu0 %v856
    %876 = vmatpush.bf16.msra.mxu0 %v855
    %877 = vmatpush.bf16.msra.mxu0 %v854
    %878 = vmatmul.bf16.gmra.mxu0 %v820
    %v879 = vpop.f32.mrf.mxu0
    %v880 = vadd.f32 %v821, %v879
    %v881 = vpop.f32.mrf.mxu0
    %v882 = vadd.f32 %v821, %v881
    %883 = vdwg.mxu0
    %v884 = vadd.f32 %v880, %v763
    %v885 = vadd.f32 %v882, %v764
    %v886 = vsel %vm431, %v884, 0.0
    %887 = vadd.xlane.f32.xlu0 %v886
    %v888 = vpop.xlane.xlu0 %887
    %v889 = vsel %vm431, %v885, 0.0
    %890 = vadd.xlane.f32.xlu0 %v889
    %v891 = vpop.xlane.xlu0 %890
    %v892 = vmul.f32 %v888, %v720
    %v893 = vmul.f32 %v891, %v720
    %v894 = vsub.f32 %v884, %v892
    %v895 = vsub.f32 %v885, %v893
    %v896 = vmul.f32 %v894, %v894
    %v897 = vmul.f32 %v895, %v895
    %v898 = vsel %vm431, %v896, 0.0
    %899 = vadd.xlane.f32.xlu0 %v898
    %v900 = vpop.xlane.xlu0 %899
    %v901 = vsel %vm431, %v897, 0.0
    %902 = vadd.xlane.f32.xlu0 %v901
    %v903 = vpop.xlane.xlu0 %902
    %v904 = vmul.f32 %v900, %v720
    %v905 = vmul.f32 %v903, %v720
    %v906 = vadd.f32 %v904, 1e-05
    %v907 = vadd.f32 %v905, 1e-05
    %v908 = vrsqrt.pop %v906
    %v909 = vmul.f32 %v908, %v906
    %v910 = vmul.f32 %v909, %v908
    %v911 = vmul.f32 0.5, %v910
    %v912 = vsub.f32 1.5, %v911
    %v913 = vmul.f32 %v908, %v912
    %vm914 = vweird.f32 %v906
    %vm915 = vweird.f32 %v908
    %vm916 = vmor %vm914, %vm915
    %v917 = vsel %vm916, %v908, %v913
    %v918 = vrsqrt.pop %v907
    %v919 = vmul.f32 %v918, %v907
    %v920 = vmul.f32 %v919, %v918
    %v921 = vmul.f32 0.5, %v920
    %v922 = vsub.f32 1.5, %v921
    %v923 = vmul.f32 %v918, %v922
    %vm924 = vweird.f32 %v907
    %vm925 = vweird.f32 %v918
    %vm926 = vmor %vm924, %vm925
    %v927 = vsel %vm926, %v918, %v923
    %v928 = vmul.f32 %v894, %v917
    %v929 = vmul.f32 %v895, %v927
    %v930 = vperm.slane %v503, 6
    %v931 = vmul.f32 %v928, %v930
    %v932 = vmul.f32 %v929, %v930
    %v933 = vperm.slane %v503, 7
    %v934 = vadd.f32 %v931, %v933
    %v935 = vadd.f32 %v932, %v933
    %v936 = vld [vmem:[#allocation2 + $0x94] sm:$0xf]
    %v937 = vld [vmem:[#allocation2 + $0x98] sm:$0xf]
    %v938 = vld [vmem:[#allocation2 + $0x9c] sm:$0xf]
    %v939 = vld [vmem:[#allocation2 + $0xa0] sm:$0xf]
    %v940 = vld [vmem:[#allocation2 + $0xa4] sm:$0xf]
    %v941 = vld [vmem:[#allocation2 + $0xa8] sm:$0xf]
    %v942 = vld [vmem:[#allocation2 + $0xac] sm:$0xf]
    %v943 = vld [vmem:[#allocation2 + $0xb0] sm:$0xf]
    %v944 = vld [vmem:[#allocation2 + $0xb4] sm:$0xf]
    %v945 = vld [vmem:[#allocation2 + $0xb8] sm:$0xf]
    %v946 = vld [vmem:[#allocation2 + $0xbc] sm:$0xf]
    %v947 = vld [vmem:[#allocation2 + $0xc0] sm:$0xf]
    %v948 = vld [vmem:[#allocation2 + $0xc4] sm:$0xf]
    %v949 = vld [vmem:[#allocation2 + $0xc8] sm:$0xf]
    %v950 = vld [vmem:[#allocation2 + $0xcc] sm:$0xf]
    %v951 = vld [vmem:[#allocation2 + $0xd0] sm:$0xf]
    %v952 = vld [vmem:[#allocation2 + $0xd4] sm:$0xf]
    %v953 = vld [vmem:[#allocation2 + $0xd8] sm:$0xf]
    %v954 = vld [vmem:[#allocation2 + $0xdc] sm:$0xf]
    %v955 = vld [vmem:[#allocation2 + $0xe0] sm:$0xf]
    %v956 = vld [vmem:[#allocation2 + $0xe4] sm:$0xf]
    %v957 = vld [vmem:[#allocation2 + $0xe8] sm:$0xf]
    %v958 = vld [vmem:[#allocation2 + $0xec] sm:$0xf]
    %v959 = vld [vmem:[#allocation2 + $0xf0] sm:$0xf]
    %v960 = vld [vmem:[#allocation2 + $0xf4] sm:$0xf]
    %v961 = vld [vmem:[#allocation2 + $0xf8] sm:$0xf]
    %v962 = vld [vmem:[#allocation2 + $0xfc] sm:$0xf]
    %v963 = vld [vmem:[#allocation2 + $0x100] sm:$0xf]
    %v964 = vld [vmem:[#allocation2 + $0x104] sm:$0xf]
    %v965 = vld [vmem:[#allocation2 + $0x108] sm:$0xf]
    %v966 = vld [vmem:[#allocation2 + $0x10c] sm:$0xf]
    %v967 = vld [vmem:[#allocation2 + $0x110] sm:$0xf]
    %v968 = vld [vmem:[#allocation6 + $0x33] sm:$0xff]
    %v969 = vld [vmem:[#allocation6 + $0x3b] sm:$0x1]
    %v970 = vpack.c.bf16 %v935, %v934
    %v971 = vperm.slane %v968, 0
    %v976 = vunpack.c.l.b16 %v936
    %v977 = vunpack.c.l.b16 %v937
    %v978 = vunpack.c.l.b16 %v938
    %v979 = vunpack.c.l.b16 %v939
    %v980 = vpack.c.b16 %v977, %v976
    %v981 = vpack.c.b16 %v979, %v978
    %v985 = vsel %vm431, %v970, 0
    %987 = vmatpush.bf16.msra.mxu0 0
    %988 = vmatpush.bf16.msra.mxu0 0
    %989 = vmatpush.bf16.msra.mxu0 0
    %990 = vmatpush.bf16.msra.mxu0 0
    %991 = vmatpush.bf16.msra.mxu0 0
    %992 = vmatpush.bf16.msra.mxu0 0
    %993 = vmatpush.bf16.msra.mxu0 %v981
    %994 = vmatpush.bf16.msra.mxu0 %v980
    %995 = vmatmul.bf16.gmra.mxu0 %v985
    %v996 = vpop.f32.mrf.mxu0
    %v997 = vadd.f32 %v971, %v996
    %v998 = vpop.f32.mrf.mxu0
    %v999 = vadd.f32 %v971, %v998
    %1000 = vdwg.mxu0
    %v1001 = vperm.slane %v968, 1
    %v1006 = vunpack.c.l.b16 %v940
    %v1007 = vunpack.c.l.b16 %v941
    %v1008 = vunpack.c.l.b16 %v942
    %v1009 = vunpack.c.l.b16 %v943
    %v1010 = vpack.c.b16 %v1007, %v1006
    %v1011 = vpack.c.b16 %v1009, %v1008
    %1014 = vmatpush.bf16.msra.mxu0 0
    %1015 = vmatpush.bf16.msra.mxu0 0
    %1016 = vmatpush.bf16.msra.mxu0 0
    %1017 = vmatpush.bf16.msra.mxu0 0
    %1018 = vmatpush.bf16.msra.mxu0 0
    %1019 = vmatpush.bf16.msra.mxu0 0
    %1020 = vmatpush.bf16.msra.mxu0 %v1011
    %1021 = vmatpush.bf16.msra.mxu0 %v1010
    %1022 = vmatmul.bf16.gmra.mxu0 %v985
    %v1023 = vpop.f32.mrf.mxu0
    %v1024 = vadd.f32 %v1001, %v1023
    %v1025 = vpop.f32.mrf.mxu0
    %v1026 = vadd.f32 %v1001, %v1025
    %1027 = vdwg.mxu0
    %v1028 = vperm.slane %v968, 2
    %v1033 = vunpack.c.l.b16 %v944
    %v1034 = vunpack.c.l.b16 %v945
    %v1035 = vunpack.c.l.b16 %v946
    %v1036 = vunpack.c.l.b16 %v947
    %v1037 = vpack.c.b16 %v1034, %v1033
    %v1038 = vpack.c.b16 %v1036, %v1035
    %1041 = vmatpush.bf16.msra.mxu0 0
    %1042 = vmatpush.bf16.msra.mxu0 0
    %1043 = vmatpush.bf16.msra.mxu0 0
    %1044 = vmatpush.bf16.msra.mxu0 0
    %1045 = vmatpush.bf16.msra.mxu0 0
    %1046 = vmatpush.bf16.msra.mxu0 0
    %1047 = vmatpush.bf16.msra.mxu0 %v1038
    %1048 = vmatpush.bf16.msra.mxu0 %v1037
    %1049 = vmatmul.bf16.gmra.mxu0 %v985
    %v1050 = vpop.f32.mrf.mxu0
    %v1051 = vadd.f32 %v1028, %v1050
    %v1052 = vpop.f32.mrf.mxu0
    %v1053 = vadd.f32 %v1028, %v1052
    %1054 = vdwg.mxu0
    %v1055 = vmul.f32 %v997, %v1024
    %v1056 = vmul.f32 %v997, %v1026
    %v1057 = vmul.f32 %v999, %v1024
    %v1058 = vmul.f32 %v999, %v1026
    %v1060 = vsel %vm431, %v1055, 0
    %v1063 = vsel %vm431, %v1056, 0
    %v1066 = vsel %vm431, %v1057, 0
    %v1069 = vsel %vm431, %v1058, 0
    %1071 = vmatpush.msra.mxu0 0.0
    %1072 = vmatpush.msra.mxu0 0.0
    %1073 = vmatpush.msra.mxu0 0.0
    %1074 = vmatpush.msra.mxu0 0.0
    %1075 = vmatpush.msra.mxu0 0.0
    %1076 = vmatpush.msra.mxu0 0.0
    %1077 = vmatpush.msra.mxu0 0.0
    %1078 = vmatpush.msra.mxu0 0.0
    %1079 = vmatpush.msra.mxu0 0.0
    %1080 = vmatpush.msra.mxu0 0.0
    %1081 = vmatpush.msra.mxu0 0.0
    %1082 = vmatpush.msra.mxu0 0.0
    %1083 = vmatpush.msra.mxu0 %v68
    %1084 = vmatpush.msra.mxu0 %v67
    %1085 = vmatpush.msra.mxu0 %v66
    %1086 = vmatpush.msra.mxu0 %v65
    %1087 = vmatmul.f32.gmra.mxu0 %v1060
    %v1088 = vpop.f32.mrf.mxu0
    %v1089 = vadd.f32 0.0, %v1088
    %1090 = vmatmul.f32.gmra.mxu0 %v1063
    %v1091 = vpop.f32.mrf.mxu0
    %v1092 = vadd.f32 0.0, %v1091
    %1093 = vmatmul.f32.gmra.mxu0 %v1066
    %v1094 = vpop.f32.mrf.mxu0
    %v1095 = vadd.f32 0.0, %v1094
    %1096 = vmatmul.f32.gmra.mxu0 %v1069
    %v1097 = vpop.f32.mrf.mxu0
    %v1098 = vadd.f32 0.0, %v1097
    %1099 = vdwg.mxu0
    %v1100 = vsel %vm431, %v1089, -inf
    %v1101 = vsel %vm431, %v1092, -inf
    %v1102 = vmax.f32 %v1100, %v1101
    %v1103 = vsel %vm431, %v1095, -inf
    %v1104 = vsel %vm431, %v1098, -inf
    %v1105 = vmax.f32 %v1103, %v1104
    %v1106 = vsub.f32 %v1089, %v1102
    %v1107 = vsub.f32 %v1092, %v1102
    %v1108 = vsub.f32 %v1095, %v1105
    %v1109 = vsub.f32 %v1098, %v1105
    %v1110 = vmul.f32 %v1106, 1.442695
    %v1111 = vpow.pop %v1110
    %v1112 = vmul.f32 %v1107, 1.442695
    %v1113 = vpow.pop %v1112
    %v1114 = vmul.f32 %v1108, 1.442695
    %v1115 = vpow.pop %v1114
    %v1116 = vmul.f32 %v1109, 1.442695
    %v1117 = vpow.pop %v1116
    %v1118 = vsel %vm431, %v1111, 0.0
    %v1119 = vsel %vm431, %v1113, 0.0
    %v1120 = vadd.f32 %v1118, %v1119
    %v1121 = vsel %vm431, %v1115, 0.0
    %v1122 = vsel %vm431, %v1117, 0.0
    %v1123 = vadd.f32 %v1121, %v1122
    %v1124 = vrcp.pop %v1120
    %v1125 = vrcp.pop %v1123
    %v1126 = vmul.f32 %v1111, %v1124
    %v1127 = vmul.f32 %v1113, %v1124
    %v1128 = vmul.f32 %v1115, %v1125
    %v1129 = vmul.f32 %v1117, %v1125
    %v1130 = vmul.f32 %v1126, %v1051
    %v1131 = vmul.f32 %v1127, %v1053
    %v1132 = vmul.f32 %v1128, %v1051
    %v1133 = vmul.f32 %v1129, %v1053
    %v1134 = vsel %vm431, %v1130, 0.0
    %v1135 = vsel %vm431, %v1131, 0.0
    %v1136 = vadd.f32 %v1134, %v1135
    %v1137 = vsel %vm431, %v1132, 0.0
    %v1138 = vsel %vm431, %v1133, 0.0
    %v1139 = vadd.f32 %v1137, %v1138
    %v1140 = vpack.c.bf16 %v1139, %v1136
    %v1141 = vperm.slane %v968, 3
    %v1146 = vunpack.c.l.b16 %v948
    %v1147 = vunpack.c.l.b16 %v949
    %v1148 = vunpack.c.l.b16 %v950
    %v1149 = vunpack.c.l.b16 %v951
    %v1150 = vpack.c.b16 %v1147, %v1146
    %v1151 = vpack.c.b16 %v1149, %v1148
    %v1155 = vsel %vm431, %v1140, 0
    %1157 = vmatpush.bf16.msra.mxu0 0
    %1158 = vmatpush.bf16.msra.mxu0 0
    %1159 = vmatpush.bf16.msra.mxu0 0
    %1160 = vmatpush.bf16.msra.mxu0 0
    %1161 = vmatpush.bf16.msra.mxu0 0
    %1162 = vmatpush.bf16.msra.mxu0 0
    %1163 = vmatpush.bf16.msra.mxu0 %v1151
    %1164 = vmatpush.bf16.msra.mxu0 %v1150
    %1165 = vmatmul.bf16.gmra.mxu0 %v1155
    %v1166 = vpop.f32.mrf.mxu0
    %v1167 = vadd.f32 %v1141, %v1166
    %v1168 = vpop.f32.mrf.mxu0
    %v1169 = vadd.f32 %v1141, %v1168
    %1170 = vdwg.mxu0
    %v1171 = vadd.f32 %v1167, %v934
    %v1172 = vadd.f32 %v1169, %v935
    %v1173 = vsel %vm431, %v1171, 0.0
    %1174 = vadd.xlane.f32.xlu0 %v1173
    %v1175 = vpop.xlane.xlu0 %1174
    %v1176 = vsel %vm431, %v1172, 0.0
    %1177 = vadd.xlane.f32.xlu0 %v1176
    %v1178 = vpop.xlane.xlu0 %1177
    %v1179 = vmul.f32 %v1175, %v720
    %v1180 = vmul.f32 %v1178, %v720
    %v1181 = vsub.f32 %v1171, %v1179
    %v1182 = vsub.f32 %v1172, %v1180
    %v1183 = vmul.f32 %v1181, %v1181
    %v1184 = vmul.f32 %v1182, %v1182
    %v1185 = vsel %vm431, %v1183, 0.0
    %1186 = vadd.xlane.f32.xlu0 %v1185
    %v1187 = vpop.xlane.xlu0 %1186
    %v1188 = vsel %vm431, %v1184, 0.0
    %1189 = vadd.xlane.f32.xlu0 %v1188
    %v1190 = vpop.xlane.xlu0 %1189
    %v1191 = vmul.f32 %v1187, %v720
    %v1192 = vmul.f32 %v1190, %v720
    %v1193 = vadd.f32 %v1191, 1e-05
    %v1194 = vadd.f32 %v1192, 1e-05
    %v1195 = vrsqrt.pop %v1193
    %v1196 = vmul.f32 %v1195, %v1193
    %v1197 = vmul.f32 %v1196, %v1195
    %v1198 = vmul.f32 0.5, %v1197
    %v1199 = vsub.f32 1.5, %v1198
    %v1200 = vmul.f32 %v1195, %v1199
    %vm1201 = vweird.f32 %v1193
    %vm1202 = vweird.f32 %v1195
    %vm1203 = vmor %vm1201, %vm1202
    %v1204 = vsel %vm1203, %v1195, %v1200
    %v1205 = vrsqrt.pop %v1194
    %v1206 = vmul.f32 %v1205, %v1194
    %v1207 = vmul.f32 %v1206, %v1205
    %v1208 = vmul.f32 0.5, %v1207
    %v1209 = vsub.f32 1.5, %v1208
    %v1210 = vmul.f32 %v1205, %v1209
    %vm1211 = vweird.f32 %v1194
    %vm1212 = vweird.f32 %v1205
    %vm1213 = vmor %vm1211, %vm1212
    %v1214 = vsel %vm1213, %v1205, %v1210
    %v1215 = vmul.f32 %v1181, %v1204
    %v1216 = vmul.f32 %v1182, %v1214
    %v1217 = vperm.slane %v968, 4
    %v1218 = vmul.f32 %v1215, %v1217
    %v1219 = vmul.f32 %v1216, %v1217
    %v1220 = vperm.slane %v968, 5
    %v1221 = vadd.f32 %v1218, %v1220
    %v1222 = vadd.f32 %v1219, %v1220
    %v1223 = vld [vmem:[#allocation4 + $0x10] sm:$0xf]
    %v1224 = vld [vmem:[#allocation4 + $0x14] sm:$0xf]
    %v1225 = vld [vmem:[#allocation4 + $0x18] sm:$0xf]
    %v1226 = vld [vmem:[#allocation4 + $0x1c] sm:$0xf]
    %v1227 = vpack.c.bf16 %v1222, %v1221
    %v1228 = vperm.slane %v771, 1
    %v1233 = vunpack.c.l.b16 %v1223
    %v1234 = vunpack.c.l.b16 %v1224
    %v1235 = vunpack.c.l.b16 %v1225
    %v1236 = vunpack.c.l.b16 %v1226
    %v1237 = vpack.c.b16 %v1234, %v1233
    %v1238 = vpack.c.b16 %v1236, %v1235
    %v1242 = vsel %vm431, %v1227, 0
    %1244 = vmatpush.bf16.msra.mxu0 0
    %1245 = vmatpush.bf16.msra.mxu0 0
    %1246 = vmatpush.bf16.msra.mxu0 0
    %1247 = vmatpush.bf16.msra.mxu0 0
    %1248 = vmatpush.bf16.msra.mxu0 0
    %1249 = vmatpush.bf16.msra.mxu0 0
    %1250 = vmatpush.bf16.msra.mxu0 %v1238
    %1251 = vmatpush.bf16.msra.mxu0 %v1237
    %1252 = vmatmul.bf16.gmra.mxu0 %v1242
    %v1253 = vpop.f32.mrf.mxu0
    %v1254 = vadd.f32 %v1228, %v1253
    %v1255 = vpop.f32.mrf.mxu0
    %v1256 = vadd.f32 %v1228, %v1255
    %1257 = vdwg.mxu0
    %v1258 = vmul.f32 %v1254, 0.5
    %v1259 = vmul.f32 %v1256, 0.5
    %v1260 = vmul.f32 %v1254, %v1254
    %v1261 = vmul.f32 %v1256, %v1256
    %v1262 = vmul.f32 %v1260, %v1254
    %v1263 = vmul.f32 %v1261, %v1256
    %v1264 = vmul.f32 %v1262, 0.044715
    %v1265 = vmul.f32 %v1263, 0.044715
    %v1266 = vadd.f32 %v1254, %v1264
    %v1267 = vadd.f32 %v1256, %v1265
    %v1268 = vmul.f32 %v1266, 0.7978846
    %v1269 = vmul.f32 %v1267, 0.7978846
    %v1270 = vtanh.pop %v1268
    %v1271 = vtanh.pop %v1269
    %v1272 = vadd.f32 %v1270, 1.0
    %v1273 = vadd.f32 %v1271, 1.0
    %v1274 = vmul.f32 %v1258, %v1272
    %v1275 = vmul.f32 %v1259, %v1273
    %v1276 = vpack.c.bf16 %v1275, %v1274
    %v1277 = vperm.slane %v969, 0
    %v1294 = vunpack.c.l.b16 %v952
    %v1295 = vunpack.c.l.b16 %v953
    %v1296 = vunpack.c.l.b16 %v954
    %v1297 = vunpack.c.l.b16 %v955
    %v1298 = vunpack.c.l.b16 %v956
    %v1299 = vunpack.c.l.b16 %v957
    %v1300 = vunpack.c.l.b16 %v958
    %v1301 = vunpack.c.l.b16 %v959
    %v1302 = vunpack.c.l.b16 %v960
    %v1303 = vunpack.c.l.b16 %v961
    %v1304 = vunpack.c.l.b16 %v962
    %v1305 = vunpack.c.l.b16 %v963
    %v1306 = vunpack.c.l.b16 %v964
    %v1307 = vunpack.c.l.b16 %v965
    %v1308 = vunpack.c.l.b16 %v966
    %v1309 = vunpack.c.l.b16 %v967
    %v1310 = vpack.c.b16 %v1295, %v1294
    %v1311 = vpack.c.b16 %v1297, %v1296
    %v1312 = vpack.c.b16 %v1299, %v1298
    %v1313 = vpack.c.b16 %v1301, %v1300
    %v1314 = vpack.c.b16 %v1303, %v1302
    %v1315 = vpack.c.b16 %v1305, %v1304
    %v1316 = vpack.c.b16 %v1307, %v1306
    %v1317 = vpack.c.b16 %v1309, %v1308
    %1326 = vmatpush.bf16.msra.mxu0 %v1317
    %1327 = vmatpush.bf16.msra.mxu0 %v1316
    %1328 = vmatpush.bf16.msra.mxu0 %v1315
    %1329 = vmatpush.bf16.msra.mxu0 %v1314
    %1330 = vmatpush.bf16.msra.mxu0 %v1313
    %1331 = vmatpush.bf16.msra.mxu0 %v1312
    %1332 = vmatpush.bf16.msra.mxu0 %v1311
    %1333 = vmatpush.bf16.msra.mxu0 %v1310
    %1334 = vmatmul.bf16.gmra.mxu0 %v1276
    %v1335 = vpop.f32.mrf.mxu0
    %v1336 = vadd.f32 %v1277, %v1335
    %v1337 = vpop.f32.mrf.mxu0
    %v1338 = vadd.f32 %v1277, %v1337
    %1339 = vdwg.mxu0
    %v1340 = vadd.f32 %v1336, %v1221
    %v1341 = vadd.f32 %v1338, %v1222
    %v1342 = vsel %vm431, %v1340, 0.0
    %1343 = vadd.xlane.f32.xlu0 %v1342
    %v1344 = vpop.xlane.xlu0 %1343
    %v1345 = vsel %vm431, %v1341, 0.0
    %1346 = vadd.xlane.f32.xlu0 %v1345
    %v1347 = vpop.xlane.xlu0 %1346
    %v1348 = vmul.f32 %v1344, %v720
    %v1349 = vmul.f32 %v1347, %v720
    %v1350 = vsub.f32 %v1340, %v1348
    %v1351 = vsub.f32 %v1341, %v1349
    %v1352 = vmul.f32 %v1350, %v1350
    %v1353 = vmul.f32 %v1351, %v1351
    %v1354 = vsel %vm431, %v1352, 0.0
    %1355 = vadd.xlane.f32.xlu0 %v1354
    %v1356 = vpop.xlane.xlu0 %1355
    %v1357 = vsel %vm431, %v1353, 0.0
    %1358 = vadd.xlane.f32.xlu0 %v1357
    %v1359 = vpop.xlane.xlu0 %1358
    %v1360 = vmul.f32 %v1356, %v720
    %v1361 = vmul.f32 %v1359, %v720
    %v1362 = vadd.f32 %v1360, 1e-05
    %v1363 = vadd.f32 %v1361, 1e-05
    %v1364 = vrsqrt.pop %v1362
    %v1365 = vmul.f32 %v1364, %v1362
    %v1366 = vmul.f32 %v1365, %v1364
    %v1367 = vmul.f32 0.5, %v1366
    %v1368 = vsub.f32 1.5, %v1367
    %v1369 = vmul.f32 %v1364, %v1368
    %vm1370 = vweird.f32 %v1362
    %vm1371 = vweird.f32 %v1364
    %vm1372 = vmor %vm1370, %vm1371
    %v1373 = vsel %vm1372, %v1364, %v1369
    %v1374 = vrsqrt.pop %v1363
    %v1375 = vmul.f32 %v1374, %v1363
    %v1376 = vmul.f32 %v1375, %v1374
    %v1377 = vmul.f32 0.5, %v1376
    %v1378 = vsub.f32 1.5, %v1377
    %v1379 = vmul.f32 %v1374, %v1378
    %vm1380 = vweird.f32 %v1363
    %vm1381 = vweird.f32 %v1374
    %vm1382 = vmor %vm1380, %vm1381
    %v1383 = vsel %vm1382, %v1374, %v1379
    %v1384 = vmul.f32 %v1350, %v1373
    %v1385 = vmul.f32 %v1351, %v1383
    %v1386 = vperm.slane %v968, 6
    %v1387 = vmul.f32 %v1384, %v1386
    %v1388 = vmul.f32 %v1385, %v1386
    %v1389 = vperm.slane %v968, 7
    %v1390 = vadd.f32 %v1387, %v1389
    %v1391 = vadd.f32 %v1388, %v1389
    %v1392 = vsel %vm431, %v1390, 0.0
    %v1393 = vrot.slane %v1392, 4
    %v1394 = vadd.f32 %v1392, %v1393
    %v1395 = vrot.slane %v1394, 2
    %v1396 = vadd.f32 %v1394, %v1395
    %v1397 = vrot.slane %v1396, 1
    %v1398 = vadd.f32 %v1396, %v1397
    %v1399 = vsel %vm431, %v1391, 0.0
    %v1400 = vrot.slane %v1399, 4
    %v1401 = vadd.f32 %v1399, %v1400
    %v1402 = vrot.slane %v1401, 2
    %v1403 = vadd.f32 %v1401, %v1402
    %v1404 = vrot.slane %v1403, 1
    %v1405 = vadd.f32 %v1403, %v1404
    %v1406 = vrcp.pop 8.0
    %v1407 = vmul.f32 8.0, %v1406
    %v1408 = vsub.f32 1.0, %v1407
    %v1409 = vmul.f32 %v1406, %v1408
    %v1410 = vadd.f32 %v1406, %v1409
    %vm1411 = vweird.f32 %v1406
    %v1412 = vsel %vm1411, %v1406, %v1410
    %v1413 = vmul.f32 %v1398, %v1412
    %v1414 = vmul.f32 %v1405, %v1412
    %v1415 = vld [vmem:[#allocation2 + $0x114] sm:$0xf]
    %v1416 = vld [vmem:[#allocation2 + $0x118] sm:$0xf]
    %v1417 = vld [vmem:[#allocation2 + $0x11c] sm:$0xf]
    %v1418 = vld [vmem:[#allocation2 + $0x120] sm:$0xf]
    %v1419 = vld [vmem:[#allocation6 + $0x3c] sm:$0x1]
    %v1420 = vld [vmem:[#allocation6 + $0x3d] sm:$0x1]
    %v1421 = vld [vmem:[#allocation6 + $0x3e] sm:$0x1]
    %v1422 = vpack.c.bf16 %v1413, %v1413
    %v1423 = vpack.c.bf16 %v1414, %v1414
    %v1424 = vperm.slane %v1419, 0
    %v1427 = vunpack.c.l.b16 %v1422
    %v1428 = vunpack.c.l.b16 %v1423
    %vm1429 = vcmask 1041409
    %v1430 = vsel %vm1429, %v1428, %v1427
    %v1431 = vpack.c.b16 %v1430, %v1430
    %v1436 = vunpack.c.l.b16 %v1415
    %v1437 = vunpack.c.l.b16 %v1416
    %v1438 = vunpack.c.l.b16 %v1417
    %v1439 = vunpack.c.l.b16 %v1418
    %v1440 = vpack.c.b16 %v1437, %v1436
    %v1441 = vpack.c.b16 %v1439, %v1438
    %v1445 = vsel %vm431, %v1431, 0
    %1447 = vmatpush.bf16.msra.mxu0 0
    %1448 = vmatpush.bf16.msra.mxu0 0
    %1449 = vmatpush.bf16.msra.mxu0 0
    %1450 = vmatpush.bf16.msra.mxu0 0
    %1451 = vmatpush.bf16.msra.mxu0 0
    %1452 = vmatpush.bf16.msra.mxu0 0
    %1453 = vmatpush.bf16.msra.mxu0 %v1441
    %1454 = vmatpush.bf16.msra.mxu0 %v1440
    %1455 = vmatmul.bf16.gmra.mxu0 %v1445
    %v1456 = vpop.f32.mrf.mxu0
    %v1457 = vadd.f32 %v1424, %v1456
    %v1458 = vpop.f32.mrf.mxu0
    %1459 = vdwg.mxu0
    %v1460 = vmax.f32 %v1457, 0.0
    %v1461 = vperm.slane %v1420, 0
    %v1462 = vmul.f32 %v1460, %v1461
    %vm1463 = vcmask 254976
    %v1464 = vsel %vm1463, %v1462, 0.0
    %1465 = vadd.xlane.f32.xlu0 %v1464
    %v1466 = vpop.xlane.xlu0 %1465
    %v1467 = vperm.slane %v1421, 0
    %v1468 = vadd.f32 %v1466, %v1467
    %1470 = vset.pattern.permute.xlu0 0
    %1471 = vperm.xlu0 %1470, %v1468
    %v1472 = vpop.permute.xlu0 %1471
    %1474 = vst [vmem:[%s4] sm:$0x3] %v1472
    // Predicated region
    $region30: #{_lambda_.1} parent=1 // pred_check
      _
    $region31: #{_lambda_.1} parent=1 // pred_check_branch
      %1476 = sbr.rel (0) target = $region33
    $region32: #{_lambda_.1} parent=1 // pred_region
      _
    $region33: #{_lambda_.1} parent=1 // pred_fallthru
      _
    // Predicated region
    $region34: #{_lambda_.1} parent=1 // pred_check
      _
    $region35: #{_lambda_.1} parent=1 // pred_check_branch
      %1478 = sbr.rel (0) target = $region37
    $region36: #{_lambda_.1} parent=1 // pred_region
      _
    $region37: #{_lambda_.1} parent=1 // pred_fallthru
      _
    %1479 = vsyncpa [#allocation3], 1
    %1480 = vsyncpa [#allocation5], 1

</llo_original>
